<compile_context>
chip_gen: v7x
topology: tpu7x:2x2x1
jax: 0.10.0
libtpu: 0.0.40
codegen_flags: <defaults>
</compile_context>

<pallas_src>
import functools
import math

import jax
import jax.numpy as jnp
import numpy as np
from jax.experimental import pallas as pl
from jax.experimental.pallas import tpu as pltpu


# ----------------------------------------------------------------------------
# helpers
# ----------------------------------------------------------------------------
def _round_up(x, m):
    return ((x + m - 1) // m) * m


def _pick_row_tile(r):
    # Split small slabs into 2 'parallel' blocks so both v7x TensorCores get
    # work (and the pipeline is double-buffered); cap at 512 rows otherwise.
    if r <= 1024:
        return max(8, _round_up((r + 1) // 2, 8))
    return 512


_VMEM_LIMIT_CACHE = None


def _vmem_limit():
    """Raised scoped-VMEM limit for the monolithic attention / assign blocks,
    capped safely below physical VMEM (64 MiB on v7x, 128 MiB on v5e/v6e)."""
    global _VMEM_LIMIT_CACHE
    if _VMEM_LIMIT_CACHE is None:
        try:
            cap = int(pltpu.get_tpu_info().vmem_capacity_bytes)
            _VMEM_LIMIT_CACHE = int(min(100 * 2 ** 20, int(cap * 0.9)))
        except Exception:
            _VMEM_LIMIT_CACHE = 64 * 2 ** 20
    return _VMEM_LIMIT_CACHE


def mlp_acts(n_layers):
    """Activations for torch MLP([...]): BN+ReLU on all but the last layer."""
    return tuple(["relu"] * (n_layers - 1) + ["none"])


# ----------------------------------------------------------------------------
# Pallas kernels
# ----------------------------------------------------------------------------
def _mlp_chain_kernel(*refs, acts):
    """Fused chain of 1x1-conv / linear layers (BN folded). bf16 MXU matmuls,
    f32 accumulation; the intermediate activation never leaves VMEM/vregs."""
    x_ref, out_ref = refs[0], refs[-1]
    h = x_ref[...]
    for i, act in enumerate(acts):
        w = refs[1 + 2 * i][...]            # (Cin_i, Cout_i)  bf16
        b = refs[2 + 2 * i][...]            # (1, Cout_i)      f32
        h = jnp.dot(h.astype(jnp.bfloat16), w,
                    preferred_element_type=jnp.float32) + b
        if act == "relu":
            h = jnp.maximum(h, 0.0)
    out_ref[...] = h.astype(out_ref.dtype)


def mlp_chain_pallas(x, layers, acts, out_dtype=jnp.float32):
    """x: (R, Cin0); layers: list of {'wT': (Cin_i, Cout_i) bf16, 'b': (1, Cout_i) f32}."""
    assert len(layers) == len(acts)
    R, cin = x.shape
    cout = layers[-1]["wT"].shape[1]

    tile = _pick_row_tile(R)
    rp = _round_up(R, tile)
    if rp != R:
        x = jnp.pad(x, ((0, rp - R), (0, 0)))

    args = [x]
    in_specs = [pl.BlockSpec((tile, cin), lambda i: (i, 0))]
    for lp in layers:
        ci, co = lp["wT"].shape
        args += [lp["wT"], lp["b"]]
        # index_map (0,0): weights stay VMEM-resident across the row grid.
        in_specs += [pl.BlockSpec((ci, co), lambda i: (0, 0)),
                     pl.BlockSpec((1, co), lambda i: (0, 0))]

    out = pl.pallas_call(
        functools.partial(_mlp_chain_kernel, acts=tuple(acts)),
        out_shape=jax.ShapeDtypeStruct((rp, cout), out_dtype),
        grid=(rp // tile,),
        in_specs=in_specs,
        out_specs=pl.BlockSpec((tile, cout), lambda i: (i, 0)),
        compiler_params=pltpu.CompilerParams(
            dimension_semantics=("parallel",)),
    )(*args)
    return out[:R] if rp != R else out


def _gnn_layer_kernel(x32_ref, xb_ref, sb_ref,
                      wq_ref, bq_ref, wk_ref, bk_ref, wv_ref, bv_ref,
                      wm_ref, bm_ref, w1x_ref, w1m_ref, b1_ref,
                      w2_ref, b2_ref,
                      o32_ref, o16_ref, *, nhead, inv_sqrt_dh):
    """One full AttentionalPropagation step for one batch sample:
    qkv projection -> per-head softmax attention -> merge -> MLP -> residual.
    Heads are channel-contiguous (weights were permuted at init), so head
    slices are static lane ranges and the message is a lane-dense (N, D) slab.
    """
    x32 = x32_ref[0]                         # (N, D) f32 residual stream
    xb = xb_ref[0]                           # (N, D) bf16
    sb = sb_ref[0]                           # (M, D) bf16 (self or cross source)

    q = (jnp.dot(xb, wq_ref[...], preferred_element_type=jnp.float32)
         + bq_ref[...]) * inv_sqrt_dh        # fold 1/sqrt(Dh) into q
    k = jnp.dot(sb, wk_ref[...], preferred_element_type=jnp.float32) + bk_ref[...]
    v = jnp.dot(sb, wv_ref[...], preferred_element_type=jnp.float32) + bv_ref[...]

    d_model = q.shape[-1]
    dh = d_model // nhead
    # TODO(synk): flash-tile the (N, M) score block over keys for production
    # sequence lengths (mandatory under v7x's 64 MiB VMEM).
    heads = []
    for h in range(nhead):                   # static unroll, contiguous heads
        qh = q[:, h * dh:(h + 1) * dh].astype(jnp.bfloat16)
        kh = k[:, h * dh:(h + 1) * dh].astype(jnp.bfloat16)
        vh = v[:, h * dh:(h + 1) * dh].astype(jnp.bfloat16)
        s = jnp.einsum("nd,md->nm", qh, kh, preferred_element_type=jnp.float32)
        s = s - jnp.max(s, axis=-1, keepdims=True)
        p = jnp.exp(s)
        l = jnp.sum(p, axis=-1, keepdims=True)
        oh = jnp.einsum("nm,md->nd", p.astype(jnp.bfloat16), vh,
                        preferred_element_type=jnp.float32)
        heads.append(oh * pl.reciprocal(l, approx=True))   # divide on the EUP
    msg = jnp.concatenate(heads, axis=-1)    # (N, D) lane-dense message

    merged = jnp.dot(msg.astype(jnp.bfloat16), wm_ref[...],
                     preferred_element_type=jnp.float32) + bm_ref[...]
    # MLP([2D, 2D, D]) on cat([x, merged]) without materializing the concat.
    h1 = (jnp.dot(xb, w1x_ref[...], preferred_element_type=jnp.float32)
          + jnp.dot(merged.astype(jnp.bfloat16), w1m_ref[...],
                    preferred_element_type=jnp.float32)
          + b1_ref[...])
    h1 = jnp.maximum(h1, 0.0)
    delta = jnp.dot(h1.astype(jnp.bfloat16), w2_ref[...],
                    preferred_element_type=jnp.float32) + b2_ref[...]

    new = x32 + delta                        # residual add in f32
    o32_ref[0] = new
    o16_ref[0] = new.astype(jnp.bfloat16)    # bf16 copy for the next layer


def gnn_layer_pallas(x32, xb, sb, lp, nhead):
    """x32/xb: (B, N, D) f32/bf16 descriptors; sb: (B, M, D) bf16 source.
    Returns (new_desc_f32, new_desc_bf16)."""
    B, N, D = x32.shape
    M = sb.shape[1]

    def wspec(shp):
        return pl.BlockSpec(shp, lambda b: (0, 0))

    in_specs = [
        pl.BlockSpec((1, N, D), lambda b: (b, 0, 0)),
        pl.BlockSpec((1, N, D), lambda b: (b, 0, 0)),
        pl.BlockSpec((1, M, D), lambda b: (b, 0, 0)),
        wspec(lp["wq"].shape), wspec(lp["bq"].shape),
        wspec(lp["wk"].shape), wspec(lp["bk"].shape),
        wspec(lp["wv"].shape), wspec(lp["bv"].shape),
        wspec(lp["wm"].shape), wspec(lp["bm"].shape),
        wspec(lp["w1x"].shape), wspec(lp["w1m"].shape), wspec(lp["b1"].shape),
        wspec(lp["w2"].shape), wspec(lp["b2"].shape),
    ]
    out32, out16 = pl.pallas_call(
        functools.partial(_gnn_layer_kernel, nhead=nhead,
                          inv_sqrt_dh=1.0 / math.sqrt(D // nhead)),
        out_shape=(jax.ShapeDtypeStruct((B, N, D), jnp.float32),
                   jax.ShapeDtypeStruct((B, N, D), jnp.bfloat16)),
        grid=(B,),
        in_specs=in_specs,
        out_specs=(pl.BlockSpec((1, N, D), lambda b: (b, 0, 0)),
                   pl.BlockSpec((1, N, D), lambda b: (b, 0, 0))),
        compiler_params=pltpu.CompilerParams(
            dimension_semantics=("parallel",),
            vmem_limit_bytes=_vmem_limit()),
    )(x32, xb, sb,
      lp["wq"], lp["bq"], lp["wk"], lp["bk"], lp["wv"], lp["bv"],
      lp["wm"], lp["bm"], lp["w1x"], lp["w1m"], lp["b1"],
      lp["w2"], lp["b2"])
    return out32, out16


def _head_kernel(x_ref, wf_ref, bf_ref, wp_ref, bp_ref, wz_ref, bz_ref,
                 md_ref, z_ref):
    """feature_layer (conv+BN+ReLU) -> {final_proj (d**-0.25 folded),
    matchability} fused; feat never leaves VMEM."""
    x = x_ref[...].astype(jnp.bfloat16)
    feat = jnp.dot(x, wf_ref[...], preferred_element_type=jnp.float32) + bf_ref[...]
    feat = jnp.maximum(feat, 0.0)
    featb = feat.astype(jnp.bfloat16)
    md = jnp.dot(featb, wp_ref[...], preferred_element_type=jnp.float32) + bp_ref[...]
    md_ref[...] = md.astype(md_ref.dtype)
    z_ref[...] = jnp.dot(featb, wz_ref[...],
                         preferred_element_type=jnp.float32) + bz_ref[...]


def head_pallas(xb, wf, bf_, wp, bp, wz, bz):
    """xb: (R, D) bf16 -> (mdesc (R, D) bf16, matchability logits (R, 1) f32)."""
    R, D = xb.shape
    tile = _pick_row_tile(R)
    rp = _round_up(R, tile)
    if rp != R:
        xb = jnp.pad(xb, ((0, rp - R), (0, 0)))

    def const(shp):
        return pl.BlockSpec(shp, lambda i: (0, 0))

    md, z = pl.pallas_call(
        _head_kernel,
        out_shape=(jax.ShapeDtypeStruct((rp, D), jnp.bfloat16),
                   jax.ShapeDtypeStruct((rp, 1), jnp.float32)),
        grid=(rp // tile,),
        in_specs=[pl.BlockSpec((tile, D), lambda i: (i, 0)),
                  const(wf.shape), const(bf_.shape),
                  const(wp.shape), const(bp.shape),
                  const(wz.shape), const(bz.shape)],
        out_specs=(pl.BlockSpec((tile, D), lambda i: (i, 0)),
                   pl.BlockSpec((tile, 1), lambda i: (i, 0))),
        compiler_params=pltpu.CompilerParams(
            dimension_semantics=("parallel",)),
    )(xb, wf, bf_, wp, bp, wz, bz)
    if rp != R:
        md, z = md[:R], z[:R]
    return md, z


def _assign_kernel(m0_ref, m1_ref, oa_ref, obt_ref, dc_ref, dr_ref, o_ref):
    """sigmoid_log_double_softmax core with LSE vectors (no full log-softmax
    temporaries).  Writes the padded scores lane-densely: rows 0..M-1 are one
    (M, Npad) slab containing [core | dustbin col | zeros]; the last row is
    [dustbin row | 0 corner | zeros]."""
    a = m0_ref[0]                            # (M, D) bf16, d**-0.25 pre-folded
    c = m1_ref[0]                            # (N, D) bf16, d**-0.25 pre-folded
    sim = jnp.einsum("md,nd->mn", a, c, preferred_element_type=jnp.float32)

    rmax = jnp.max(sim, axis=1, keepdims=True)                      # (M, 1)
    rlse = rmax + jnp.log(jnp.sum(jnp.exp(sim - rmax), axis=1, keepdims=True))
    cmax = jnp.max(sim, axis=0, keepdims=True)                      # (1, N)
    clse = cmax + jnp.log(jnp.sum(jnp.exp(sim - cmax), axis=0, keepdims=True))

    core = 2.0 * sim - rlse - clse + oa_ref[0] + obt_ref[0]         # (M, N)
    m, n = core.shape
    n_pad = o_ref.shape[-1]

    main_parts = [core, dc_ref[0]]
    if n_pad - n - 1 > 0:
        main_parts.append(jnp.zeros((m, n_pad - n - 1), jnp.float32))
    o_ref[0, 0:m, :] = jnp.concatenate(main_parts, axis=1)          # lane-dense

    last_parts = [dr_ref[0]]
    if n_pad - n > 0:                       # covers the zero corner + padding
        last_parts.append(jnp.zeros((1, n_pad - n), jnp.float32))
    o_ref[0, m:m + 1, :] = jnp.concatenate(last_parts, axis=1)


def assign_pallas(mdesc0, mdesc1, oa, obt, dust_col, dust_row):
    """mdesc0: (B,M,D) bf16, mdesc1: (B,N,D) bf16 -> padded scores
    (B, M+1, round_up(N+1,128)) f32; slice [:, :M+1, :N+1] outside."""
    B, M, D = mdesc0.shape
    N = mdesc1.shape[1]
    n_pad = _round_up(N + 1, 128)
    # TODO(synk): tile over rows of mdesc0 (grid (B, M//tm)) with a carried
    # column-LSE for production M, N (v7x 64 MiB VMEM).
    return pl.pallas_call(
        _assign_kernel,
        out_shape=jax.ShapeDtypeStruct((B, M + 1, n_pad), jnp.float32),
        grid=(B,),
        in_specs=[pl.BlockSpec((1, M, D), lambda b: (b, 0, 0)),
                  pl.BlockSpec((1, N, D), lambda b: (b, 0, 0)),
                  pl.BlockSpec((1, M, 1), lambda b: (b, 0, 0)),
                  pl.BlockSpec((1, 1, N), lambda b: (b, 0, 0)),
                  pl.BlockSpec((1, M, 1), lambda b: (b, 0, 0)),
                  pl.BlockSpec((1, 1, N), lambda b: (b, 0, 0))],
        out_specs=pl.BlockSpec((1, M + 1, n_pad), lambda b: (b, 0, 0)),
        compiler_params=pltpu.CompilerParams(
            dimension_semantics=("parallel",),
            vmem_limit_bytes=_vmem_limit()),
    )(mdesc0, mdesc1, oa, obt, dust_col, dust_row)


# ----------------------------------------------------------------------------
# Parameter initialization (deterministic, synthetic); BN folded into weights.
# ----------------------------------------------------------------------------
def init_linear(key, cin, cout, *, bias=True, bn=False, zero_bias=False,
                w_scale=0.2, bf16=True, out_scale=1.0,
                col_perm=None, row_perm=None):
    kw, kb = jax.random.split(key)
    w = jax.random.normal(kw, (cout, cin), jnp.float32) * (w_scale / np.sqrt(cin))
    if bias and not zero_bias:
        b = jax.random.normal(kb, (cout,), jnp.float32) * 0.01
    else:
        b = jnp.zeros((cout,), jnp.float32)
    if bn:
        # Eval-mode BatchNorm1d folded into a per-channel affine.
        # TODO(synk): with a real checkpoint, use the actual running
        # mean/var/gamma/beta here instead of the synthetic (0, 1, 1, 0).
        eps = 1e-5
        r_mean = jnp.zeros((cout,), jnp.float32)
        r_var = jnp.ones((cout,), jnp.float32)
        gamma = jnp.ones((cout,), jnp.float32)
        beta = jnp.zeros((cout,), jnp.float32)
        scale = gamma / jnp.sqrt(r_var + eps)
        shift = beta - r_mean * scale
    else:
        scale = jnp.ones((cout,), jnp.float32)
        shift = jnp.zeros((cout,), jnp.float32)
    wT = (w * scale[:, None]).T * out_scale           # (cin, cout), BN folded
    bf = (b * scale + shift) * out_scale
    if col_perm is not None:                          # reorder output channels
        wT = wT[:, col_perm]
        bf = bf[col_perm]
    if row_perm is not None:                          # reorder input channels
        wT = wT[row_perm, :]
    if bf16:
        wT = wT.astype(jnp.bfloat16)
    return {"wT": wT, "b": bf[None]}


def init_params(key, d_model, nhead, names, enc_layers):
    keys = iter(jax.random.split(key, 4096))
    nk = lambda: next(keys)
    dh = d_model // nhead
    # torch channel layout is c = d*H + h; permute once so c' = h*Dh + d
    # (head-contiguous) -> no runtime head transposes.
    head_perm = np.arange(d_model).reshape(dh, nhead).T.reshape(-1)

    def make_mlp(channels):
        layers, n = [], len(channels)
        for i in range(1, n):
            last = i == n - 1
            layers.append(init_linear(nk(), channels[i - 1], channels[i],
                                      bias=True, bn=not last, zero_bias=last))
        return layers

    p = {"kenc3d": make_mlp([3] + enc_layers + [d_model]),
         "kenc2d": make_mlp([2] + enc_layers + [d_model])}

    gnn = []
    for _ in names:
        q = init_linear(nk(), d_model, d_model, bias=True, col_perm=head_perm)
        k = init_linear(nk(), d_model, d_model, bias=True, col_perm=head_perm)
        v = init_linear(nk(), d_model, d_model, bias=True, col_perm=head_perm)
        merge = init_linear(nk(), d_model, d_model, bias=True,
                            row_perm=head_perm)
        m1 = init_linear(nk(), 2 * d_model, 2 * d_model, bias=True, bn=True)
        m2 = init_linear(nk(), 2 * d_model, d_model, bias=True, zero_bias=True)
        gnn.append({
            "wq": q["wT"], "bq": q["b"],
            "wk": k["wT"], "bk": k["b"],
            "wv": v["wT"], "bv": v["b"],
            "wm": merge["wT"], "bm": merge["b"],
            "w1x": m1["wT"][:d_model], "w1m": m1["wT"][d_model:], "b1": m1["b"],
            "w2": m2["wT"], "b2": m2["b"],
        })
    p["gnn"] = gnn

    p["feature_layer"] = init_linear(nk(), d_model, d_model, bias=False, bn=True)
    d4 = max(d_model // 4, 1)
    p["pc_score"] = [init_linear(nk(), d_model, d_model, bias=False, bn=True),
                     init_linear(nk(), d_model, d4, bias=False, bn=True)]
    # Cout=1 sigmoid layer runs in plain JAX (lane width 1 is pure overhead).
    p["pc_score_last"] = init_linear(nk(), d4, 1, bias=False, bf16=False)
    # MatchAssignment: the d**-0.25 similarity scaling is folded into
    # final_proj (both mdesc0 and mdesc1 get it -> product carries 1/sqrt(d)).
    p["final_proj"] = init_linear(nk(), d_model, d_model, bias=True,
                                  out_scale=float(d_model) ** -0.25)
    p["matchability"] = init_linear(nk(), d_model, 1, bias=True)
    return p


# ----------------------------------------------------------------------------
# Model glue (jitted stages wrapping the Pallas kernels)
# ----------------------------------------------------------------------------
def normalize_coords(kpts, image_width, image_height):
    size = jnp.array([[image_width, image_height]], jnp.float32)     # (1, 2)
    center = size / 2.0
    scaling = jnp.max(size, axis=1, keepdims=True) * 0.7             # (1, 1)
    return (kpts - center[:, None, :]) / scaling[:, None, :]


def filter_matches_padded(scores_pad, M, N, th):
    inner = scores_pad[:, :M, :N]
    max0 = jnp.max(inner, axis=2)
    m0 = jnp.argmax(inner, axis=2).astype(jnp.int32)
    m1 = jnp.argmax(inner, axis=1).astype(jnp.int32)
    indices0 = jnp.arange(m0.shape[1], dtype=jnp.int32)[None]
    indices1 = jnp.arange(m1.shape[1], dtype=jnp.int32)[None]
    mutual0 = indices0 == jnp.take_along_axis(m1, m0, axis=1)
    mutual1 = indices1 == jnp.take_along_axis(m0, m1, axis=1)
    max0_exp = jnp.exp(max0)
    mscores0 = jnp.where(mutual0, max0_exp, 0.0)
    mscores1 = jnp.where(mutual1, jnp.take_along_axis(mscores0, m1, axis=1), 0.0)
    valid0 = mutual0 & (mscores0 > th)
    valid1 = mutual1 & jnp.take_along_axis(valid0, m1, axis=1)
    m0 = jnp.where(valid0, m0, -1)
    m1 = jnp.where(valid1, m1, -1)
    return m0, m1, mscores0, mscores1


@functools.partial(jax.jit, static_argnames=("image_h", "image_w"))
def _encode_stage(p_kenc3d, p_kenc2d, desc3d_in, desc2d_in, kp3d, kp2d, *,
                  image_h, image_w):
    B, N0, D = desc3d_in.shape
    N1 = desc2d_in.shape[1]
    kp2d_nor = normalize_coords(kp2d.astype(jnp.float32), image_w, image_h)
    kp3d_xyz = kp3d.astype(jnp.float32)[..., :3]
    enc0 = mlp_chain_pallas(kp3d_xyz.reshape(B * N0, 3), p_kenc3d,
                            mlp_acts(len(p_kenc3d))).reshape(B, N0, D)
    enc1 = mlp_chain_pallas(kp2d_nor.reshape(B * N1, 2), p_kenc2d,
                            mlp_acts(len(p_kenc2d))).reshape(B, N1, D)
    desc0 = desc3d_in + enc0
    desc1 = desc2d_in + enc1
    return desc0, desc1, desc0.astype(jnp.bfloat16), desc1.astype(jnp.bfloat16)


@functools.partial(jax.jit, static_argnames=("name", "nhead"))
def _gnn_layer(lp, desc0, desc1, desc0_b, desc1_b, *, name, nhead):
    """One AttentionalPropagation step applied to both point clouds.
    Both deltas are computed from the OLD descriptors (matches torch)."""
    if name == "cross":
        src0_b, src1_b = desc1_b, desc0_b
    else:
        src0_b, src1_b = desc0_b, desc1_b
    n0_32, n0_16 = gnn_layer_pallas(desc0, desc0_b, src0_b, lp, nhead)
    n1_32, n1_16 = gnn_layer_pallas(desc1, desc1_b, src1_b, lp, nhead)
    return n0_32, n1_32, n0_16, n1_16


@jax.jit
def _head_stage(p, desc0_b, desc1_b):
    B, N0, D = desc0_b.shape
    N1 = desc1_b.shape[1]
    r0, r1 = B * N0, B * N1
    fl, fp, mt = p["feature_layer"], p["final_proj"], p["matchability"]

    # feature_layer -> {final_proj (scaled), matchability logits} fused.
    md0, z0 = head_pallas(desc0_b.reshape(r0, D), fl["wT"], fl["b"],
                          fp["wT"], fp["b"], mt["wT"], mt["b"])
    md1, z1 = head_pallas(desc1_b.reshape(r1, D), fl["wT"], fl["b"],
                          fp["wT"], fp["b"], mt["wT"], mt["b"])
    mdesc0 = md0.reshape(B, N0, D)
    mdesc1 = md1.reshape(B, N1, D)
    z0 = z0.reshape(B, N0, 1)
    z1 = z1.reshape(B, N1, 1)

    # pc_score: two fused layers + tiny (D//4 -> 1) sigmoid matvec in plain JAX
    h = mlp_chain_pallas(desc0_b.reshape(r0, D), p["pc_score"],
                         ("relu", "relu"))
    out = jax.nn.sigmoid(h @ p["pc_score_last"]["wT"]).reshape(B, N0, 1)

    oa = jax.nn.log_sigmoid(z0)                                   # (B, N0, 1)
    ob = jax.nn.log_sigmoid(z1)                                   # (B, N1, 1)
    obt = jnp.transpose(ob, (0, 2, 1))                            # (B, 1, N1)
    dust_col = jax.nn.log_sigmoid(-z0)                            # (B, N0, 1)
    dust_row = jnp.transpose(jax.nn.log_sigmoid(-z1), (0, 2, 1))  # (B, 1, N1)

    scores_pad = assign_pallas(mdesc0, mdesc1, oa, obt, dust_col, dust_row)
    scores = scores_pad[:, :N0 + 1, :N1 + 1]
    m0, m1, ms0, ms1 = filter_matches_padded(scores_pad, N0, N1, 0.0)
    return scores, m0, out, oa, ob


def attention_module_forward(params, names, nhead, desc3d_in, desc2d_in,
                             kp3d, kp2d, image_h, image_w):
    """AttentionModule.forward (descriptor / matching path).
    desc3d_in: (B, N0, D) stands in for the PointNet FP output des3d,
    desc2d_in: (B, N1, D) stands in for the SuperPoint descriptors des2d."""
    # TODO(synk): SuperPoint, PointNetSetAbstraction and
    # PointNetFeaturePropagation are not defined in the provided source; their
    # descriptor outputs are taken as direct inputs here.
    desc0, desc1, desc0_b, desc1_b = _encode_stage(
        params["kenc3d"], params["kenc2d"], desc3d_in, desc2d_in, kp3d, kp2d,
        image_h=image_h, image_w=image_w)

    for lp, name in zip(params["gnn"], names):
        desc0, desc1, desc0_b, desc1_b = _gnn_layer(
            lp, desc0, desc1, desc0_b, desc1_b, name=name, nhead=nhead)

    head_p = {k: params[k] for k in ("feature_layer", "pc_score",
                                     "pc_score_last", "final_proj",
                                     "matchability")}
    scores, m0, out, oa, ob = _head_stage(head_p, desc0_b, desc1_b)

    # Data-dependent match extraction (variable #matches) stays on the host.
    match_list, sim_list, scores0, scores1 = [], [], [], []
    m0_host = np.asarray(m0)
    for i in range(scores.shape[0]):
        valid = m0_host[i] > -1
        idx0 = np.nonzero(valid)[0].astype(np.int32)
        idx1 = m0_host[i][valid].astype(np.int32)
        match_list.append(jnp.asarray(np.stack([idx0, idx1], axis=-1)))
        sim_list.append(scores[i])
        scores0.append(oa[i:i + 1])
        scores1.append(ob[i:i + 1])
    return match_list, sim_list, out, scores0, scores1


# ----------------------------------------------------------------------------
# Main
# ----------------------------------------------------------------------------
if __name__ == "__main__":
    B, N0, N1 = 2, 64, 48          # batch, #3D keypoints, #2D keypoints
    D_MODEL, NHEAD = 32, 4         # scaled-down d_model=256, nhead=4
    ENC_LAYERS = [8, 16]           # scaled-down [32, 64, 128, 256] widths
    H_IMG, W_IMG = 64, 80
    NAMES = ["self", "cross"] * 6  # AttentionalGNN(d_model, ['self','cross']*6)

    key = jax.random.PRNGKey(0)
    k_par, k_d0, k_d1, k_p3, k_p2 = jax.random.split(key, 5)
    params = init_params(k_par, D_MODEL, NHEAD, NAMES, ENC_LAYERS)

    desc3d_in = jax.random.normal(k_d0, (B, N0, D_MODEL), jnp.float32)
    desc2d_in = jax.random.normal(k_d1, (B, N1, D_MODEL), jnp.float32)
    kp3d = jax.random.uniform(k_p3, (B, N0, 3), jnp.float32, -1.0, 1.0)
    kp2d = (jax.random.uniform(k_p2, (B, N1, 2), jnp.float32, 0.0, 1.0)
            * jnp.array([W_IMG - 1, H_IMG - 1], jnp.float32))

    match_list, sim_list, out, scores0, scores1 = attention_module_forward(
        params, NAMES, NHEAD, desc3d_in, desc2d_in, kp3d, kp2d, H_IMG, W_IMG)

    jax.block_until_ready((out, tuple(sim_list), tuple(match_list),
                           tuple(scores0), tuple(scores1)))
    print("KERNEL_OK")
</pallas_src>

<mosaic_0001>
module attributes {stable_mosaic.version = 11 : i64} {
  func.func @_mlp_chain_kernel(%arg0: i32, %arg1: memref<64x3xf32, #tpu.memory_space<vmem>>, %arg2: memref<3x8xbf16, #tpu.memory_space<vmem>>, %arg3: memref<1x8xf32, #tpu.memory_space<vmem>>, %arg4: memref<8x16xbf16, #tpu.memory_space<vmem>>, %arg5: memref<1x16xf32, #tpu.memory_space<vmem>>, %arg6: memref<16x32xbf16, #tpu.memory_space<vmem>>, %arg7: memref<1x32xf32, #tpu.memory_space<vmem>>, %arg8: memref<64x32xf32, #tpu.memory_space<vmem>>) attributes {dimension_semantics = [#tpu.dimension_semantics<parallel>], iteration_bounds = array<i64: 2>, scalar_prefetch = 0 : i64, scratch_operands = 0 : i64, tpu.core_type = #tpu.core_type<tc>, window_params = [{transform_indices = @transform_0, window_bounds = array<i64: 64, 3>}, {pipeline_mode = #tpu.pipeline_mode<synchronous>, transform_indices = @transform_1, window_bounds = array<i64: 3, 8>}, {pipeline_mode = #tpu.pipeline_mode<synchronous>, transform_indices = @transform_2, window_bounds = array<i64: 1, 8>}, {pipeline_mode = #tpu.pipeline_mode<synchronous>, transform_indices = @transform_3, window_bounds = array<i64: 8, 16>}, {pipeline_mode = #tpu.pipeline_mode<synchronous>, transform_indices = @transform_4, window_bounds = array<i64: 1, 16>}, {pipeline_mode = #tpu.pipeline_mode<synchronous>, transform_indices = @transform_5, window_bounds = array<i64: 16, 32>}, {pipeline_mode = #tpu.pipeline_mode<synchronous>, transform_indices = @transform_6, window_bounds = array<i64: 1, 32>}, {transform_indices = @transform_7, window_bounds = array<i64: 64, 32>}]} {
    %c0 = arith.constant 0 : index
    %c0_0 = arith.constant 0 : index
    %0 = vector.load %arg1[%c0, %c0_0] : memref<64x3xf32, #tpu.memory_space<vmem>>, vector<64x3xf32>
    %c0_1 = arith.constant 0 : index
    %c0_2 = arith.constant 0 : index
    %1 = vector.load %arg2[%c0_1, %c0_2] : memref<3x8xbf16, #tpu.memory_space<vmem>>, vector<3x8xbf16>
    %c0_3 = arith.constant 0 : index
    %c0_4 = arith.constant 0 : index
    %2 = vector.load %arg3[%c0_3, %c0_4] : memref<1x8xf32, #tpu.memory_space<vmem>>, vector<1x8xf32>
    %3 = arith.truncf %0 : vector<64x3xf32> to vector<64x3xbf16>
    %cst = arith.constant dense<0.000000e+00> : vector<64x8xf32>
    %4 = tpu.matmul %3, %1, %cst {dimension_numbers = #tpu.dot_dimension_numbers<[1], [0], [0], [1], [0, 0, 1, 1], [], []>} : vector<64x3xbf16>, vector<3x8xbf16>, vector<64x8xf32> -> vector<64x8xf32>
    %5 = vector.broadcast %2 : vector<1x8xf32> to vector<64x8xf32>
    %6 = arith.addf %4, %5 : vector<64x8xf32>
    %cst_5 = arith.constant 0.000000e+00 : f32
    %7 = vector.broadcast %cst_5 : f32 to vector<64x8xf32>
    %8 = arith.maximumf %6, %7 : vector<64x8xf32>
    %c0_6 = arith.constant 0 : index
    %c0_7 = arith.constant 0 : index
    %9 = vector.load %arg4[%c0_6, %c0_7] : memref<8x16xbf16, #tpu.memory_space<vmem>>, vector<8x16xbf16>
    %c0_8 = arith.constant 0 : index
    %c0_9 = arith.constant 0 : index
    %10 = vector.load %arg5[%c0_8, %c0_9] : memref<1x16xf32, #tpu.memory_space<vmem>>, vector<1x16xf32>
    %11 = arith.truncf %8 : vector<64x8xf32> to vector<64x8xbf16>
    %cst_10 = arith.constant dense<0.000000e+00> : vector<64x16xf32>
    %12 = tpu.matmul %11, %9, %cst_10 {dimension_numbers = #tpu.dot_dimension_numbers<[1], [0], [0], [1], [0, 0, 1, 1], [], []>} : vector<64x8xbf16>, vector<8x16xbf16>, vector<64x16xf32> -> vector<64x16xf32>
    %13 = vector.broadcast %10 : vector<1x16xf32> to vector<64x16xf32>
    %14 = arith.addf %12, %13 : vector<64x16xf32>
    %cst_11 = arith.constant 0.000000e+00 : f32
    %15 = vector.broadcast %cst_11 : f32 to vector<64x16xf32>
    %16 = arith.maximumf %14, %15 : vector<64x16xf32>
    %c0_12 = arith.constant 0 : index
    %c0_13 = arith.constant 0 : index
    %17 = vector.load %arg6[%c0_12, %c0_13] : memref<16x32xbf16, #tpu.memory_space<vmem>>, vector<16x32xbf16>
    %c0_14 = arith.constant 0 : index
    %c0_15 = arith.constant 0 : index
    %18 = vector.load %arg7[%c0_14, %c0_15] : memref<1x32xf32, #tpu.memory_space<vmem>>, vector<1x32xf32>
    %19 = arith.truncf %16 : vector<64x16xf32> to vector<64x16xbf16>
    %cst_16 = arith.constant dense<0.000000e+00> : vector<64x32xf32>
    %20 = tpu.matmul %19, %17, %cst_16 {dimension_numbers = #tpu.dot_dimension_numbers<[1], [0], [0], [1], [0, 0, 1, 1], [], []>} : vector<64x16xbf16>, vector<16x32xbf16>, vector<64x32xf32> -> vector<64x32xf32>
    %21 = vector.broadcast %18 : vector<1x32xf32> to vector<64x32xf32>
    %22 = arith.addf %20, %21 : vector<64x32xf32>
    %c0_17 = arith.constant 0 : index
    %c0_18 = arith.constant 0 : index
    %23 = vector.load %arg8[%c0_17, %c0_18] : memref<64x32xf32, #tpu.memory_space<vmem>>, vector<64x32xf32>
    tpu.vector_store %arg8[%c0_17, %c0_18], %22 {strides = array<i32>} : memref<64x32xf32, #tpu.memory_space<vmem>>, vector<64x32xf32>,
    return
  }
  func.func @transform_0(%arg0: i32) -> (i32, i32) {
    %c0_i32 = arith.constant 0 : i32
    %c0_i32_0 = arith.constant 0 : i32
    return %arg0, %c0_i32 : i32, i32
  }
  func.func @transform_1(%arg0: i32) -> (i32, i32) {
    %c0_i32 = arith.constant 0 : i32
    %c0_i32_0 = arith.constant 0 : i32
    %c0_i32_1 = arith.constant 0 : i32
    return %c0_i32, %c0_i32_0 : i32, i32
  }
  func.func @transform_2(%arg0: i32) -> (i32, i32) {
    %c0_i32 = arith.constant 0 : i32
    %c0_i32_0 = arith.constant 0 : i32
    %c0_i32_1 = arith.constant 0 : i32
    return %c0_i32, %c0_i32_0 : i32, i32
  }
  func.func @transform_3(%arg0: i32) -> (i32, i32) {
    %c0_i32 = arith.constant 0 : i32
    %c0_i32_0 = arith.constant 0 : i32
    %c0_i32_1 = arith.constant 0 : i32
    return %c0_i32, %c0_i32_0 : i32, i32
  }
  func.func @transform_4(%arg0: i32) -> (i32, i32) {
    %c0_i32 = arith.constant 0 : i32
    %c0_i32_0 = arith.constant 0 : i32
    %c0_i32_1 = arith.constant 0 : i32
    return %c0_i32, %c0_i32_0 : i32, i32
  }
  func.func @transform_5(%arg0: i32) -> (i32, i32) {
    %c0_i32 = arith.constant 0 : i32
    %c0_i32_0 = arith.constant 0 : i32
    %c0_i32_1 = arith.constant 0 : i32
    return %c0_i32, %c0_i32_0 : i32, i32
  }
  func.func @transform_6(%arg0: i32) -> (i32, i32) {
    %c0_i32 = arith.constant 0 : i32
    %c0_i32_0 = arith.constant 0 : i32
    %c0_i32_1 = arith.constant 0 : i32
    return %c0_i32, %c0_i32_0 : i32, i32
  }
  func.func @transform_7(%arg0: i32) -> (i32, i32) {
    %c0_i32 = arith.constant 0 : i32
    %c0_i32_0 = arith.constant 0 : i32
    return %arg0, %c0_i32 : i32, i32
  }
}

module attributes {stable_mosaic.version = 11 : i64} {
  func.func @_mlp_chain_kernel(%arg0: i32, %arg1: memref<48x2xf32, #tpu.memory_space<vmem>>, %arg2: memref<2x8xbf16, #tpu.memory_space<vmem>>, %arg3: memref<1x8xf32, #tpu.memory_space<vmem>>, %arg4: memref<8x16xbf16, #tpu.memory_space<vmem>>, %arg5: memref<1x16xf32, #tpu.memory_space<vmem>>, %arg6: memref<16x32xbf16, #tpu.memory_space<vmem>>, %arg7: memref<1x32xf32, #tpu.memory_space<vmem>>, %arg8: memref<48x32xf32, #tpu.memory_space<vmem>>) attributes {dimension_semantics = [#tpu.dimension_semantics<parallel>], iteration_bounds = array<i64: 2>, scalar_prefetch = 0 : i64, scratch_operands = 0 : i64, tpu.core_type = #tpu.core_type<tc>, window_params = [{transform_indices = @transform_0, window_bounds = array<i64: 48, 2>}, {pipeline_mode = #tpu.pipeline_mode<synchronous>, transform_indices = @transform_1, window_bounds = array<i64: 2, 8>}, {pipeline_mode = #tpu.pipeline_mode<synchronous>, transform_indices = @transform_2, window_bounds = array<i64: 1, 8>}, {pipeline_mode = #tpu.pipeline_mode<synchronous>, transform_indices = @transform_3, window_bounds = array<i64: 8, 16>}, {pipeline_mode = #tpu.pipeline_mode<synchronous>, transform_indices = @transform_4, window_bounds = array<i64: 1, 16>}, {pipeline_mode = #tpu.pipeline_mode<synchronous>, transform_indices = @transform_5, window_bounds = array<i64: 16, 32>}, {pipeline_mode = #tpu.pipeline_mode<synchronous>, transform_indices = @transform_6, window_bounds = array<i64: 1, 32>}, {transform_indices = @transform_7, window_bounds = array<i64: 48, 32>}]} {
    %c0 = arith.constant 0 : index
    %c0_0 = arith.constant 0 : index
    %0 = vector.load %arg1[%c0, %c0_0] : memref<48x2xf32, #tpu.memory_space<vmem>>, vector<48x2xf32>
    %c0_1 = arith.constant 0 : index
    %c0_2 = arith.constant 0 : index
    %1 = vector.load %arg2[%c0_1, %c0_2] : memref<2x8xbf16, #tpu.memory_space<vmem>>, vector<2x8xbf16>
    %c0_3 = arith.constant 0 : index
    %c0_4 = arith.constant 0 : index
    %2 = vector.load %arg3[%c0_3, %c0_4] : memref<1x8xf32, #tpu.memory_space<vmem>>, vector<1x8xf32>
    %3 = arith.truncf %0 : vector<48x2xf32> to vector<48x2xbf16>
    %cst = arith.constant dense<0.000000e+00> : vector<48x8xf32>
    %4 = tpu.matmul %3, %1, %cst {dimension_numbers = #tpu.dot_dimension_numbers<[1], [0], [0], [1], [0, 0, 1, 1], [], []>} : vector<48x2xbf16>, vector<2x8xbf16>, vector<48x8xf32> -> vector<48x8xf32>
    %5 = vector.broadcast %2 : vector<1x8xf32> to vector<48x8xf32>
    %6 = arith.addf %4, %5 : vector<48x8xf32>
    %cst_5 = arith.constant 0.000000e+00 : f32
    %7 = vector.broadcast %cst_5 : f32 to vector<48x8xf32>
    %8 = arith.maximumf %6, %7 : vector<48x8xf32>
    %c0_6 = arith.constant 0 : index
    %c0_7 = arith.constant 0 : index
    %9 = vector.load %arg4[%c0_6, %c0_7] : memref<8x16xbf16, #tpu.memory_space<vmem>>, vector<8x16xbf16>
    %c0_8 = arith.constant 0 : index
    %c0_9 = arith.constant 0 : index
    %10 = vector.load %arg5[%c0_8, %c0_9] : memref<1x16xf32, #tpu.memory_space<vmem>>, vector<1x16xf32>
    %11 = arith.truncf %8 : vector<48x8xf32> to vector<48x8xbf16>
    %cst_10 = arith.constant dense<0.000000e+00> : vector<48x16xf32>
    %12 = tpu.matmul %11, %9, %cst_10 {dimension_numbers = #tpu.dot_dimension_numbers<[1], [0], [0], [1], [0, 0, 1, 1], [], []>} : vector<48x8xbf16>, vector<8x16xbf16>, vector<48x16xf32> -> vector<48x16xf32>
    %13 = vector.broadcast %10 : vector<1x16xf32> to vector<48x16xf32>
    %14 = arith.addf %12, %13 : vector<48x16xf32>
    %cst_11 = arith.constant 0.000000e+00 : f32
    %15 = vector.broadcast %cst_11 : f32 to vector<48x16xf32>
    %16 = arith.maximumf %14, %15 : vector<48x16xf32>
    %c0_12 = arith.constant 0 : index
    %c0_13 = arith.constant 0 : index
    %17 = vector.load %arg6[%c0_12, %c0_13] : memref<16x32xbf16, #tpu.memory_space<vmem>>, vector<16x32xbf16>
    %c0_14 = arith.constant 0 : index
    %c0_15 = arith.constant 0 : index
    %18 = vector.load %arg7[%c0_14, %c0_15] : memref<1x32xf32, #tpu.memory_space<vmem>>, vector<1x32xf32>
    %19 = arith.truncf %16 : vector<48x16xf32> to vector<48x16xbf16>
    %cst_16 = arith.constant dense<0.000000e+00> : vector<48x32xf32>
    %20 = tpu.matmul %19, %17, %cst_16 {dimension_numbers = #tpu.dot_dimension_numbers<[1], [0], [0], [1], [0, 0, 1, 1], [], []>} : vector<48x16xbf16>, vector<16x32xbf16>, vector<48x32xf32> -> vector<48x32xf32>
    %21 = vector.broadcast %18 : vector<1x32xf32> to vector<48x32xf32>
    %22 = arith.addf %20, %21 : vector<48x32xf32>
    %c0_17 = arith.constant 0 : index
    %c0_18 = arith.constant 0 : index
    %23 = vector.load %arg8[%c0_17, %c0_18] : memref<48x32xf32, #tpu.memory_space<vmem>>, vector<48x32xf32>
    tpu.vector_store %arg8[%c0_17, %c0_18], %22 {strides = array<i32>} : memref<48x32xf32, #tpu.memory_space<vmem>>, vector<48x32xf32>,
    return
  }
  func.func @transform_0(%arg0: i32) -> (i32, i32) {
    %c0_i32 = arith.constant 0 : i32
    %c0_i32_0 = arith.constant 0 : i32
    return %arg0, %c0_i32 : i32, i32
  }
  func.func @transform_1(%arg0: i32) -> (i32, i32) {
    %c0_i32 = arith.constant 0 : i32
    %c0_i32_0 = arith.constant 0 : i32
    %c0_i32_1 = arith.constant 0 : i32
    return %c0_i32, %c0_i32_0 : i32, i32
  }
  func.func @transform_2(%arg0: i32) -> (i32, i32) {
    %c0_i32 = arith.constant 0 : i32
    %c0_i32_0 = arith.constant 0 : i32
    %c0_i32_1 = arith.constant 0 : i32
    return %c0_i32, %c0_i32_0 : i32, i32
  }
  func.func @transform_3(%arg0: i32) -> (i32, i32) {
    %c0_i32 = arith.constant 0 : i32
    %c0_i32_0 = arith.constant 0 : i32
    %c0_i32_1 = arith.constant 0 : i32
    return %c0_i32, %c0_i32_0 : i32, i32
  }
  func.func @transform_4(%arg0: i32) -> (i32, i32) {
    %c0_i32 = arith.constant 0 : i32
    %c0_i32_0 = arith.constant 0 : i32
    %c0_i32_1 = arith.constant 0 : i32
    return %c0_i32, %c0_i32_0 : i32, i32
  }
  func.func @transform_5(%arg0: i32) -> (i32, i32) {
    %c0_i32 = arith.constant 0 : i32
    %c0_i32_0 = arith.constant 0 : i32
    %c0_i32_1 = arith.constant 0 : i32
    return %c0_i32, %c0_i32_0 : i32, i32
  }
  func.func @transform_6(%arg0: i32) -> (i32, i32) {
    %c0_i32 = arith.constant 0 : i32
    %c0_i32_0 = arith.constant 0 : i32
    %c0_i32_1 = arith.constant 0 : i32
    return %c0_i32, %c0_i32_0 : i32, i32
  }
  func.func @transform_7(%arg0: i32) -> (i32, i32) {
    %c0_i32 = arith.constant 0 : i32
    %c0_i32_0 = arith.constant 0 : i32
    return %arg0, %c0_i32 : i32, i32
  }
}

</mosaic_0001>

<llo_original>
// kernel: _encode_stage.3
$region0: #{_encode_stage.3}
  #allocation0 [shape = 'u32[]', space=smem, size = 0x4, offset = 0x4, fixed_abs, tag = 'smem constant byte address 0x4 - core index']
  #allocation1 [shape = 'u32[144,128]{1,0:T(1,128)}', space=vmem, size = 0x12000, scoped, tag = 'internal scratch']
  %s0 = inlined_call_operand.vmem [shape: f32[96,2], index: 0, kind: input, shape index: {}]
  %s1 = inlined_call_operand.vmem [shape: bf16[2,8], index: 1, kind: input, shape index: {}]
  %s2 = inlined_call_operand.vmem [shape: f32[1,8], index: 2, kind: input, shape index: {}]
  %s3 = inlined_call_operand.vmem [shape: bf16[8,16], index: 3, kind: input, shape index: {}]
  %s4 = inlined_call_operand.vmem [shape: f32[1,16], index: 4, kind: input, shape index: {}]
  %s5 = inlined_call_operand.vmem [shape: bf16[16,32], index: 5, kind: input, shape index: {}]
  %s6 = inlined_call_operand.vmem [shape: f32[1,32], index: 6, kind: input, shape index: {}]
  %s7 = inlined_call_operand.vmem [shape: f32[96,32], index: 7, kind: output, shape index: {}]
  %s8 = sld [smem:[#allocation0]]
  $region61: #{_encode_stage.3} parent=0
    _
  %s10 = ssub.s32 1, %s8
  %s11 = scalar_select 0, %s10, %s8
  loop: start=0, step=1, limit=4
  $region2: #{_encode_stage.3} parent=0 // loop_pre_header
    _
  $region3: #{_encode_stage.3} parent=0 // loop_header
    %s13 = sphi 0, %s17
    %p14 = scmp.ge.s32.totalorder %s13, 4
    %s23 = sphi 0, %s25
    %s26 = sphi 0, %s23
    %s27 = sphi 0, %s26
    %s43 = sphi 0, %s27
    %s47 = sphi 0, %s47
    %s49 = sphi 0, %s47
    %s50 = sphi 0, %s49
    %s64 = sphi 0, %s50
    %s68 = sphi 0, %s68
    %s70 = sphi 0, %s68
    %s71 = sphi 0, %s70
    %s85 = sphi 0, %s71
    %s89 = sphi 0, %s89
    %s91 = sphi 0, %s89
    %s92 = sphi 0, %s91
    %s106 = sphi 0, %s92
    %s110 = sphi 0, %s110
    %s112 = sphi 0, %s110
    %s113 = sphi 0, %s112
    %s127 = sphi 0, %s113
    %s131 = sphi 0, %s131
    %s133 = sphi 0, %s131
    %s134 = sphi 0, %s133
    %s148 = sphi 0, %s134
    %s152 = sphi 0, %s152
    %s154 = sphi 0, %s152
    %s155 = sphi 0, %s154
    %s169 = sphi 0, %s155
    %s175 = sphi 0, %s177
    %s178 = sphi 0, %s175
    %s179 = sphi 0, %s178
    %s195 = sphi 0, %s179
  $region4: #{_encode_stage.3} parent=0 // loop_header_branch
    %16 = sbr.rel (%p14) target = $region8
  $region5: #{_encode_stage.3} parent=0 // loop_body
    %s18 = ssub.s32 %s13, 1
    %s19 = ssub.s32 %s13, 2
    %s20 = sadd.s32 %s13, 1
    %s21 = ssub.s32 %s13, %s20
    %p22 = scmp.eq.s32.totalorder %s21, 0
    %s24 = sadd.s32 %s23, 1
    %s25 = scalar_select %p22, %s23, %s24
    %p28 = pneg %p22
    %p29 = scmp.eq.s32.totalorder %s13, 1
    %p30 = por %p28, %p29
    %p31 = scmp.ne.s32.totalorder %s23, %s26
    %p32 = scmp.eq.s32.totalorder %s13, 0
    %p33 = por %p31, %p32
    %p34 = scmp.ne.s32.totalorder %s23, %s26
    %p35 = scmp.eq.s32.totalorder %s18, 1
    %p36 = por %p34, %p35
    %p37 = scmp.ne.s32.totalorder %s26, %s27
    %p38 = scmp.eq.s32.totalorder %s18, 0
    %p39 = por %p37, %p38
    %p40 = scmp.ne.s32.totalorder %s26, %s27
    %p41 = scmp.eq.s32.totalorder %s19, 1
    %p42 = por %p40, %p41
    %p44 = scmp.ne.s32.totalorder %s27, %s43
    %p45 = scmp.eq.s32.totalorder %s19, 0
    %p46 = por %p44, %p45
    %s48 = sadd.s32 %s47, 1
    %p51 = scmp.eq.s32.totalorder %s13, 1
    %p52 = scmp.ne.s32.totalorder %s47, %s49
    %p53 = scmp.eq.s32.totalorder %s13, 0
    %p54 = por %p52, %p53
    %p55 = scmp.ne.s32.totalorder %s47, %s49
    %p56 = scmp.eq.s32.totalorder %s18, 1
    %p57 = por %p55, %p56
    %p58 = scmp.ne.s32.totalorder %s49, %s50
    %p59 = scmp.eq.s32.totalorder %s18, 0
    %p60 = por %p58, %p59
    %p61 = scmp.ne.s32.totalorder %s49, %s50
    %p62 = scmp.eq.s32.totalorder %s19, 1
    %p63 = por %p61, %p62
    %p65 = scmp.ne.s32.totalorder %s50, %s64
    %p66 = scmp.eq.s32.totalorder %s19, 0
    %p67 = por %p65, %p66
    %s69 = sadd.s32 %s68, 1
    %p72 = scmp.eq.s32.totalorder %s13, 1
    %p73 = scmp.ne.s32.totalorder %s68, %s70
    %p74 = scmp.eq.s32.totalorder %s13, 0
    %p75 = por %p73, %p74
    %p76 = scmp.ne.s32.totalorder %s68, %s70
    %p77 = scmp.eq.s32.totalorder %s18, 1
    %p78 = por %p76, %p77
    %p79 = scmp.ne.s32.totalorder %s70, %s71
    %p80 = scmp.eq.s32.totalorder %s18, 0
    %p81 = por %p79, %p80
    %p82 = scmp.ne.s32.totalorder %s70, %s71
    %p83 = scmp.eq.s32.totalorder %s19, 1
    %p84 = por %p82, %p83
    %p86 = scmp.ne.s32.totalorder %s71, %s85
    %p87 = scmp.eq.s32.totalorder %s19, 0
    %p88 = por %p86, %p87
    %s90 = sadd.s32 %s89, 1
    %p93 = scmp.eq.s32.totalorder %s13, 1
    %p94 = scmp.ne.s32.totalorder %s89, %s91
    %p95 = scmp.eq.s32.totalorder %s13, 0
    %p96 = por %p94, %p95
    %p97 = scmp.ne.s32.totalorder %s89, %s91
    %p98 = scmp.eq.s32.totalorder %s18, 1
    %p99 = por %p97, %p98
    %p100 = scmp.ne.s32.totalorder %s91, %s92
    %p101 = scmp.eq.s32.totalorder %s18, 0
    %p102 = por %p100, %p101
    %p103 = scmp.ne.s32.totalorder %s91, %s92
    %p104 = scmp.eq.s32.totalorder %s19, 1
    %p105 = por %p103, %p104
    %p107 = scmp.ne.s32.totalorder %s92, %s106
    %p108 = scmp.eq.s32.totalorder %s19, 0
    %p109 = por %p107, %p108
    %s111 = sadd.s32 %s110, 1
    %p114 = scmp.eq.s32.totalorder %s13, 1
    %p115 = scmp.ne.s32.totalorder %s110, %s112
    %p116 = scmp.eq.s32.totalorder %s13, 0
    %p117 = por %p115, %p116
    %p118 = scmp.ne.s32.totalorder %s110, %s112
    %p119 = scmp.eq.s32.totalorder %s18, 1
    %p120 = por %p118, %p119
    %p121 = scmp.ne.s32.totalorder %s112, %s113
    %p122 = scmp.eq.s32.totalorder %s18, 0
    %p123 = por %p121, %p122
    %p124 = scmp.ne.s32.totalorder %s112, %s113
    %p125 = scmp.eq.s32.totalorder %s19, 1
    %p126 = por %p124, %p125
    %p128 = scmp.ne.s32.totalorder %s113, %s127
    %p129 = scmp.eq.s32.totalorder %s19, 0
    %p130 = por %p128, %p129
    %s132 = sadd.s32 %s131, 1
    %p135 = scmp.eq.s32.totalorder %s13, 1
    %p136 = scmp.ne.s32.totalorder %s131, %s133
    %p137 = scmp.eq.s32.totalorder %s13, 0
    %p138 = por %p136, %p137
    %p139 = scmp.ne.s32.totalorder %s131, %s133
    %p140 = scmp.eq.s32.totalorder %s18, 1
    %p141 = por %p139, %p140
    %p142 = scmp.ne.s32.totalorder %s133, %s134
    %p143 = scmp.eq.s32.totalorder %s18, 0
    %p144 = por %p142, %p143
    %p145 = scmp.ne.s32.totalorder %s133, %s134
    %p146 = scmp.eq.s32.totalorder %s19, 1
    %p147 = por %p145, %p146
    %p149 = scmp.ne.s32.totalorder %s134, %s148
    %p150 = scmp.eq.s32.totalorder %s19, 0
    %p151 = por %p149, %p150
    %s153 = sadd.s32 %s152, 1
    %p156 = scmp.eq.s32.totalorder %s13, 1
    %p157 = scmp.ne.s32.totalorder %s152, %s154
    %p158 = scmp.eq.s32.totalorder %s13, 0
    %p159 = por %p157, %p158
    %p160 = scmp.ne.s32.totalorder %s152, %s154
    %p161 = scmp.eq.s32.totalorder %s18, 1
    %p162 = por %p160, %p161
    %p163 = scmp.ne.s32.totalorder %s154, %s155
    %p164 = scmp.eq.s32.totalorder %s18, 0
    %p165 = por %p163, %p164
    %p166 = scmp.ne.s32.totalorder %s154, %s155
    %p167 = scmp.eq.s32.totalorder %s19, 1
    %p168 = por %p166, %p167
    %p170 = scmp.ne.s32.totalorder %s155, %s169
    %p171 = scmp.eq.s32.totalorder %s19, 0
    %p172 = por %p170, %p171
    %s173 = ssub.s32 %s13, %s20
    %p174 = scmp.eq.s32.totalorder %s173, 0
    %s176 = sadd.s32 %s175, 1
    %s177 = scalar_select %p174, %s175, %s176
    %p180 = pneg %p174
    %p181 = scmp.eq.s32.totalorder %s13, 1
    %p182 = por %p180, %p181
    %p183 = scmp.ne.s32.totalorder %s175, %s178
    %p184 = scmp.eq.s32.totalorder %s13, 0
    %p185 = por %p183, %p184
    %p186 = scmp.ne.s32.totalorder %s175, %s178
    %p187 = scmp.eq.s32.totalorder %s18, 1
    %p188 = por %p186, %p187
    %p189 = scmp.ne.s32.totalorder %s178, %s179
    %p190 = scmp.eq.s32.totalorder %s18, 0
    %p191 = por %p189, %p190
    %p192 = scmp.ne.s32.totalorder %s178, %s179
    %p193 = scmp.eq.s32.totalorder %s19, 1
    %p194 = por %p192, %p193
    %p196 = scmp.ne.s32.totalorder %s179, %s195
    %p197 = scmp.eq.s32.totalorder %s19, 0
    %p198 = por %p196, %p197
    %p199 = scmp.le.s32.totalorder 1, %s13
    %p200 = scmp.lt.s32.totalorder %s13, 3
    %p201 = pnand %p199, %p200
    %p202 = pneg %p201
    // Predicated region
    $region9: #{_encode_stage.3} parent=5 // pred_check
      _
    $region10: #{_encode_stage.3} parent=5 // pred_check_branch
      %204 = sbr.rel (%p201) target = $region12
    $region11: #{_encode_stage.3} parent=5 // pred_region
      %s205 = ssub.s32 %s13, 1
      // Predicated region
      $region13: #{_encode_stage.3} parent=11 // pred_check
        %p206 = pneg %p60
      $region14: #{_encode_stage.3} parent=11 // pred_check_branch
        %208 = sbr.rel (%p206) target = $region16
      $region15: #{_encode_stage.3} parent=11 // pred_region
        _
      $region16: #{_encode_stage.3} parent=11 // pred_fallthru
        _
      // Predicated region
      $region17: #{_encode_stage.3} parent=11 // pred_check
        %p209 = pneg %p81
      $region18: #{_encode_stage.3} parent=11 // pred_check_branch
        %211 = sbr.rel (%p209) target = $region20
      $region19: #{_encode_stage.3} parent=11 // pred_region
        _
      $region20: #{_encode_stage.3} parent=11 // pred_fallthru
        _
      // Predicated region
      $region21: #{_encode_stage.3} parent=11 // pred_check
        %p212 = pneg %p102
      $region22: #{_encode_stage.3} parent=11 // pred_check_branch
        %214 = sbr.rel (%p212) target = $region24
      $region23: #{_encode_stage.3} parent=11 // pred_region
        _
      $region24: #{_encode_stage.3} parent=11 // pred_fallthru
        _
      // Predicated region
      $region25: #{_encode_stage.3} parent=11 // pred_check
        %p215 = pneg %p123
      $region26: #{_encode_stage.3} parent=11 // pred_check_branch
        %217 = sbr.rel (%p215) target = $region28
      $region27: #{_encode_stage.3} parent=11 // pred_region
        _
      $region28: #{_encode_stage.3} parent=11 // pred_fallthru
        _
      // Predicated region
      $region29: #{_encode_stage.3} parent=11 // pred_check
        %p218 = pneg %p144
      $region30: #{_encode_stage.3} parent=11 // pred_check_branch
        %220 = sbr.rel (%p218) target = $region32
      $region31: #{_encode_stage.3} parent=11 // pred_region
        _
      $region32: #{_encode_stage.3} parent=11 // pred_fallthru
        _
      // Predicated region
      $region33: #{_encode_stage.3} parent=11 // pred_check
        %p221 = pneg %p165
      $region34: #{_encode_stage.3} parent=11 // pred_check_branch
        %223 = sbr.rel (%p221) target = $region36
      $region35: #{_encode_stage.3} parent=11 // pred_region
        _
      $region36: #{_encode_stage.3} parent=11 // pred_fallthru
        _
    $region12: #{_encode_stage.3} parent=5 // pred_fallthru
      _
    %p224 = scmp.lt.s32.totalorder %s13, 2
    // Predicated region
    $region37: #{_encode_stage.3} parent=5 // pred_check
      %p225 = pneg %p224
    $region38: #{_encode_stage.3} parent=5 // pred_check_branch
      %227 = sbr.rel (%p225) target = $region40
    $region39: #{_encode_stage.3} parent=5 // pred_region
      // Predicated region
      $region41: #{_encode_stage.3} parent=39 // pred_check
        %p228 = pneg %p33
      $region42: #{_encode_stage.3} parent=39 // pred_check_branch
        %230 = sbr.rel (%p228) target = $region44
      $region43: #{_encode_stage.3} parent=39 // pred_region
        %s231 = smul.u32 6, %s13
        %p232 = scmp.lt.s32.totalorder %s231, 11
        %s233 = scalar_select %p232, %s231, 11
        %s234 = smul.addr %s233, 8
        %s235 = scalar_lea.vmem %s0, %s234
        %s236 = smul.u32 6, %s13
      $region44: #{_encode_stage.3} parent=39 // pred_fallthru
        _
    $region40: #{_encode_stage.3} parent=5 // pred_fallthru
      _
    %p237 = scmp.le.s32.totalorder 1, %s13
    %p238 = scmp.lt.s32.totalorder %s13, 3
    %p239 = pnand %p237, %p238
    %p240 = pneg %p239
    // Predicated region
    $region45: #{_encode_stage.3} parent=5 // pred_check
      _
    $region46: #{_encode_stage.3} parent=5 // pred_check_branch
      %242 = sbr.rel (%p239) target = $region48
    $region47: #{_encode_stage.3} parent=5 // pred_region
      %s243 = ssub.s32 %s13, 1
      %s244 = smul.u32 6, %s18
      %p245 = scmp.lt.s32.totalorder %s244, 11
      %s246 = scalar_select %p245, %s244, 11
      %s247 = smul.addr %s246, 8
      %s248 = scalar_lea.vmem %s0, %s247
      %p249 = pneg %p39
      %p250 = pneg %p36
      %p251 = pneg %p60
      %p252 = pneg %p57
      %p253 = pneg %p81
      %p254 = pneg %p78
      %p255 = pneg %p102
      %p256 = pneg %p99
      %p257 = pneg %p123
      %p258 = pneg %p120
      %p259 = pneg %p144
      %p260 = pneg %p141
      %p261 = pneg %p165
      %p262 = pneg %p162
      %p263 = pneg %p191
      %p264 = pneg %p188
      %s265 = smul.u32 6, %s18
      %p266 = scmp.lt.s32.totalorder %s265, 11
      %s267 = scalar_select %p266, %s265, 11
      %s268 = smul.addr %s267, 8
      %s269 = scalar_lea.vmem %s7, %s268
      %s270 = smul.u32 6, %s18
      %p271 = scmp.lt.s32.totalorder %s270, 11
      %s272 = scalar_select %p271, %s270, 11
      %s273 = smul.addr %s272, 8
      %s274 = scalar_lea.vmem %s0, %s273
      %s275 = smul.u32 6, %s18
      %s276 = smul.u32 6, %s18
      %p277 = scmp.lt.s32.totalorder %s276, 11
      %s278 = scalar_select %p277, %s276, 11
      %s279 = smul.addr %s278, 8
      %s280 = scalar_lea.vmem %s7, %s279
      %s281 = smul.u32 6, %s18
      %v283 = vld [vmem:[%s274] sm:$0xff]
      %v284 = vld [vmem:[%s274 + $0x8] sm:$0xff]
      %v285 = vld [vmem:[%s274 + $0x10] sm:$0xff]
      %v286 = vld [vmem:[%s274 + $0x18] sm:$0xff]
      %v287 = vld [vmem:[%s274 + $0x20] sm:$0xff]
      %v288 = vld [vmem:[%s274 + $0x28] sm:$0xff]
      %v289 = vld [vmem:[%s1] sm:$0x1]
      %v290 = vld [vmem:[%s2] sm:$0x1]
      %v291 = vpack.c.bf16 %v284, %v283
      %v292 = vpack.c.bf16 %v286, %v285
      %v293 = vpack.c.bf16 %v288, %v287
      %v295 = vlaneseq
      %v296 = vshrl.u32 %v295, 7
      %v297 = vsub.s32 0, %v296
      %v298 = vrot.slane %v290, %v297
      %vm300 = vcmask 15360
      %v302 = vsel %vm300, %v291, 0
      %v305 = vsel %vm300, %v292, 0
      %v308 = vsel %vm300, %v293, 0
      %vm310 = vcmask 1040384
      %v312 = vsel %vm310, %v289, 0
      %314 = vmatprep.subr.bf16.mxu0 0
      %315 = vmatpush1.bf16.msra.mxu0 %v312
      %316 = vmatprep.subr.bf16.mxu0 0
      %317 = vmatpush1.bf16.msra.mxu0 0
      %318 = vmatprep.subr.bf16.mxu0 0
      %319 = vmatpush1.bf16.msra.mxu0 0
      %320 = vmatprep.subr.bf16.mxu0 0
      %321 = vmatpush1.bf16.msra.mxu0 0
      %322 = vmatprep.subr.bf16.mxu0 0
      %323 = vmatpush1.bf16.msra.mxu0 0
      %324 = vmatprep.subr.bf16.mxu0 0
      %325 = vmatpush1.bf16.msra.mxu0 0
      %326 = vmatprep.subr.bf16.mxu0 0
      %327 = vmatpush1.bf16.msra.mxu0 0
      %328 = vmatprep.subr.bf16.mxu0 0
      %329 = vmatpush1.bf16.msra.mxu0 0
      %330 = vmatprep.subr.bf16.mxu0 0
      %331 = vmatpush1.bf16.msra.mxu0 0
      %332 = vmatprep.subr.bf16.mxu0 0
      %333 = vmatpush1.bf16.msra.mxu0 0
      %334 = vmatprep.subr.bf16.mxu0 0
      %335 = vmatpush1.bf16.msra.mxu0 0
      %336 = vmatprep.subr.bf16.mxu0 0
      %337 = vmatpush1.bf16.msra.mxu0 0
      %338 = vmatprep.subr.bf16.mxu0 0
      %339 = vmatpush1.bf16.msra.mxu0 0
      %340 = vmatprep.subr.bf16.mxu0 0
      %341 = vmatpush1.bf16.msra.mxu0 0
      %342 = vmatprep.subr.bf16.mxu0 0
      %343 = vmatpush1.bf16.msra.mxu0 0
      %344 = vmatprep.subr.bf16.mxu0 0
      %345 = vmatpush1.bf16.msra.mxu0 0
      %346 = vmatprep.mubr.bf16.mxu0 0
      %347 = vmatmul.mubr.bf16.gmra.mrb[0].mxu0 %v302
      %v348 = vpop.f32.mrb[0].mxu0
      %v349 = vadd.f32 %v298, %v348
      %v350 = vpop.f32.mrb[0].mxu0
      %v351 = vpop.f32.mrb[0].mxu0
      %v352 = vadd.f32 %v298, %v351
      %v353 = vpop.f32.mrb[0].mxu0
      %354 = vmatprep.mubr.bf16.mxu0 0
      %355 = vmatmul.mubr.bf16.gmra.mrb[0].mxu0 %v305
      %v356 = vpop.f32.mrb[0].mxu0
      %v357 = vadd.f32 %v298, %v356
      %v358 = vpop.f32.mrb[0].mxu0
      %v359 = vpop.f32.mrb[0].mxu0
      %v360 = vadd.f32 %v298, %v359
      %v361 = vpop.f32.mrb[0].mxu0
      %362 = vmatprep.mubr.bf16.mxu0 0
      %363 = vmatmul.mubr.bf16.gmra.mrb[0].mxu0 %v308
      %v364 = vpop.f32.mrb[0].mxu0
      %v365 = vadd.f32 %v298, %v364
      %v366 = vpop.f32.mrb[0].mxu0
      %v367 = vpop.f32.mrb[0].mxu0
      %v368 = vadd.f32 %v298, %v367
      %v369 = vpop.f32.mrb[0].mxu0
      %370 = vdwg.mxu0
      %v371 = vmax.f32 %v349, 0.0
      %v372 = vmax.f32 %v352, 0.0
      %v373 = vmax.f32 %v357, 0.0
      %v374 = vmax.f32 %v360, 0.0
      %v375 = vmax.f32 %v365, 0.0
      %v376 = vmax.f32 %v368, 0.0
      %v377 = vld [vmem:[%s3] sm:$0xf]
      %v378 = vld [vmem:[%s4] sm:$0x1]
      %v379 = vpack.c.bf16 %v372, %v371
      %v380 = vpack.c.bf16 %v374, %v373
      %v381 = vpack.c.bf16 %v376, %v375
      %v383 = vlaneseq
      %v384 = vshrl.u32 %v383, 7
      %v385 = vsub.s32 0, %v384
      %v386 = vrot.slane %v378, %v385
      %vm388 = vcmask 64512
      %v390 = vsel %vm388, %v379, 0
      %v393 = vsel %vm388, %v380, 0
      %v396 = vsel %vm388, %v381, 0
      %vm398 = vcmask 1043456
      %v400 = vsel %vm398, %v377, 0
      %402 = vmatprep.subr.bf16.mxu0 0
      %403 = vmatpush1.bf16.msra.mxu0 %v400
      %404 = vmatprep.subr.bf16.mxu0 0
      %405 = vmatpush1.bf16.msra.mxu0 0
      %406 = vmatprep.subr.bf16.mxu0 0
      %407 = vmatpush1.bf16.msra.mxu0 0
      %408 = vmatprep.subr.bf16.mxu0 0
      %409 = vmatpush1.bf16.msra.mxu0 0
      %410 = vmatprep.subr.bf16.mxu0 0
      %411 = vmatpush1.bf16.msra.mxu0 0
      %412 = vmatprep.subr.bf16.mxu0 0
      %413 = vmatpush1.bf16.msra.mxu0 0
      %414 = vmatprep.subr.bf16.mxu0 0
      %415 = vmatpush1.bf16.msra.mxu0 0
      %416 = vmatprep.subr.bf16.mxu0 0
      %417 = vmatpush1.bf16.msra.mxu0 0
      %418 = vmatprep.subr.bf16.mxu0 0
      %419 = vmatpush1.bf16.msra.mxu0 0
      %420 = vmatprep.subr.bf16.mxu0 0
      %421 = vmatpush1.bf16.msra.mxu0 0
      %422 = vmatprep.subr.bf16.mxu0 0
      %423 = vmatpush1.bf16.msra.mxu0 0
      %424 = vmatprep.subr.bf16.mxu0 0
      %425 = vmatpush1.bf16.msra.mxu0 0
      %426 = vmatprep.subr.bf16.mxu0 0
      %427 = vmatpush1.bf16.msra.mxu0 0
      %428 = vmatprep.subr.bf16.mxu0 0
      %429 = vmatpush1.bf16.msra.mxu0 0
      %430 = vmatprep.subr.bf16.mxu0 0
      %431 = vmatpush1.bf16.msra.mxu0 0
      %432 = vmatprep.subr.bf16.mxu0 0
      %433 = vmatpush1.bf16.msra.mxu0 0
      %434 = vmatprep.mubr.bf16.mxu0 0
      %435 = vmatmul.mubr.bf16.gmra.mrb[0].mxu0 %v390
      %v436 = vpop.f32.mrb[0].mxu0
      %v437 = vadd.f32 %v386, %v436
      %v438 = vpop.f32.mrb[0].mxu0
      %v439 = vpop.f32.mrb[0].mxu0
      %v440 = vadd.f32 %v386, %v439
      %v441 = vpop.f32.mrb[0].mxu0
      %442 = vmatprep.mubr.bf16.mxu0 0
      %443 = vmatmul.mubr.bf16.gmra.mrb[0].mxu0 %v393
      %v444 = vpop.f32.mrb[0].mxu0
      %v445 = vadd.f32 %v386, %v444
      %v446 = vpop.f32.mrb[0].mxu0
      %v447 = vpop.f32.mrb[0].mxu0
      %v448 = vadd.f32 %v386, %v447
      %v449 = vpop.f32.mrb[0].mxu0
      %450 = vmatprep.mubr.bf16.mxu0 0
      %451 = vmatmul.mubr.bf16.gmra.mrb[0].mxu0 %v396
      %v452 = vpop.f32.mrb[0].mxu0
      %v453 = vadd.f32 %v386, %v452
      %v454 = vpop.f32.mrb[0].mxu0
      %v455 = vpop.f32.mrb[0].mxu0
      %v456 = vadd.f32 %v386, %v455
      %v457 = vpop.f32.mrb[0].mxu0
      %458 = vdwg.mxu0
      %v459 = vmax.f32 %v437, 0.0
      %v460 = vmax.f32 %v440, 0.0
      %v461 = vmax.f32 %v445, 0.0
      %v462 = vmax.f32 %v448, 0.0
      %v463 = vmax.f32 %v453, 0.0
      %v464 = vmax.f32 %v456, 0.0
      %v465 = vld [vmem:[%s5] sm:$0xf]
      %v466 = vld [vmem:[%s5 + $0x4] sm:$0xf]
      %v467 = vld [vmem:[%s6] sm:$0x1]
      %v468 = vpack.c.bf16 %v460, %v459
      %v469 = vpack.c.bf16 %v462, %v461
      %v470 = vpack.c.bf16 %v464, %v463
      %v472 = vlaneseq
      %v473 = vshrl.u32 %v472, 7
      %v474 = vsub.s32 0, %v473
      %v475 = vrot.slane %v467, %v474
      %v479 = vunpack.c.l.b16 %v465
      %v480 = vunpack.c.l.b16 %v466
      %v481 = vpack.c.b16 %v480, %v479
      %vm483 = vcmask 130048
      %v485 = vsel %vm483, %v468, 0
      %v488 = vsel %vm483, %v469, 0
      %v491 = vsel %vm483, %v470, 0
      %493 = vmatprep.subr.bf16.mxu0 0
      %494 = vmatpush1.bf16.msra.mxu0 %v481
      %495 = vmatprep.subr.bf16.mxu0 0
      %496 = vmatpush1.bf16.msra.mxu0 0
      %497 = vmatprep.subr.bf16.mxu0 0
      %498 = vmatpush1.bf16.msra.mxu0 0
      %499 = vmatprep.subr.bf16.mxu0 0
      %500 = vmatpush1.bf16.msra.mxu0 0
      %501 = vmatprep.subr.bf16.mxu0 0
      %502 = vmatpush1.bf16.msra.mxu0 0
      %503 = vmatprep.subr.bf16.mxu0 0
      %504 = vmatpush1.bf16.msra.mxu0 0
      %505 = vmatprep.subr.bf16.mxu0 0
      %506 = vmatpush1.bf16.msra.mxu0 0
      %507 = vmatprep.subr.bf16.mxu0 0
      %508 = vmatpush1.bf16.msra.mxu0 0
      %509 = vmatprep.subr.bf16.mxu0 0
      %510 = vmatpush1.bf16.msra.mxu0 0
      %511 = vmatprep.subr.bf16.mxu0 0
      %512 = vmatpush1.bf16.msra.mxu0 0
      %513 = vmatprep.subr.bf16.mxu0 0
      %514 = vmatpush1.bf16.msra.mxu0 0
      %515 = vmatprep.subr.bf16.mxu0 0
      %516 = vmatpush1.bf16.msra.mxu0 0
      %517 = vmatprep.subr.bf16.mxu0 0
      %518 = vmatpush1.bf16.msra.mxu0 0
      %519 = vmatprep.subr.bf16.mxu0 0
      %520 = vmatpush1.bf16.msra.mxu0 0
      %521 = vmatprep.subr.bf16.mxu0 0
      %522 = vmatpush1.bf16.msra.mxu0 0
      %523 = vmatprep.subr.bf16.mxu0 0
      %524 = vmatpush1.bf16.msra.mxu0 0
      %525 = vmatprep.mubr.bf16.mxu0 0
      %526 = vmatmul.mubr.bf16.gmra.mrb[0].mxu0 %v485
      %v527 = vpop.f32.mrb[0].mxu0
      %v528 = vadd.f32 %v475, %v527
      %v529 = vpop.f32.mrb[0].mxu0
      %v530 = vpop.f32.mrb[0].mxu0
      %v531 = vadd.f32 %v475, %v530
      %v532 = vpop.f32.mrb[0].mxu0
      %533 = vmatprep.mubr.bf16.mxu0 0
      %534 = vmatmul.mubr.bf16.gmra.mrb[0].mxu0 %v488
      %v535 = vpop.f32.mrb[0].mxu0
      %v536 = vadd.f32 %v475, %v535
      %v537 = vpop.f32.mrb[0].mxu0
      %v538 = vpop.f32.mrb[0].mxu0
      %v539 = vadd.f32 %v475, %v538
      %v540 = vpop.f32.mrb[0].mxu0
      %541 = vmatprep.mubr.bf16.mxu0 0
      %542 = vmatmul.mubr.bf16.gmra.mrb[0].mxu0 %v491
      %v543 = vpop.f32.mrb[0].mxu0
      %v544 = vadd.f32 %v475, %v543
      %v545 = vpop.f32.mrb[0].mxu0
      %v546 = vpop.f32.mrb[0].mxu0
      %v547 = vadd.f32 %v475, %v546
      %v548 = vpop.f32.mrb[0].mxu0
      %549 = vdwg.mxu0
      %vm550 = vcmask 261120
      %551 = vst.msk [vmem:[%s280] sm:$0xff] %vm550, %v528
      %552 = vst.msk [vmem:[%s280 + $0x8] sm:$0xff] %vm550, %v531
      %553 = vst.msk [vmem:[%s280 + $0x10] sm:$0xff] %vm550, %v536
      %554 = vst.msk [vmem:[%s280 + $0x18] sm:$0xff] %vm550, %v539
      %555 = vst.msk [vmem:[%s280 + $0x20] sm:$0xff] %vm550, %v544
      %556 = vst.msk [vmem:[%s280 + $0x28] sm:$0xff] %vm550, %v547
      %s557 = smul.u32 6, %s18
      %p558 = scmp.lt.s32.totalorder %s557, 11
      %s559 = scalar_select %p558, %s557, 11
      %s560 = smul.addr %s559, 8
      %s561 = scalar_lea.vmem %s7, %s560
      // Predicated region
      $region49: #{_encode_stage.3} parent=47 // pred_check
        %p562 = pneg %p188
      $region50: #{_encode_stage.3} parent=47 // pred_check_branch
        %564 = sbr.rel (%p562) target = $region52
      $region51: #{_encode_stage.3} parent=47 // pred_region
        %s565 = smul.u32 6, %s18
      $region52: #{_encode_stage.3} parent=47 // pred_fallthru
        _
    $region48: #{_encode_stage.3} parent=5 // pred_fallthru
      _
    %p566 = scmp.le.s32.totalorder 2, %s13
    // Predicated region
    $region53: #{_encode_stage.3} parent=5 // pred_check
      %p567 = pneg %p566
    $region54: #{_encode_stage.3} parent=5 // pred_check_branch
      %569 = sbr.rel (%p567) target = $region56
    $region55: #{_encode_stage.3} parent=5 // pred_region
      %s570 = ssub.s32 %s13, 2
      // Predicated region
      $region57: #{_encode_stage.3} parent=55 // pred_check
        %p571 = pneg %p194
      $region58: #{_encode_stage.3} parent=55 // pred_check_branch
        %573 = sbr.rel (%p571) target = $region60
      $region59: #{_encode_stage.3} parent=55 // pred_region
        %s574 = smul.u32 6, %s19
        %p575 = scmp.lt.s32.totalorder %s574, 11
        %s576 = scalar_select %p575, %s574, 11
        %s577 = smul.addr %s576, 8
        %s578 = scalar_lea.vmem %s7, %s577
      $region60: #{_encode_stage.3} parent=55 // pred_fallthru
        _
    $region56: #{_encode_stage.3} parent=5 // pred_fallthru
      _
  $region6: #{_encode_stage.3} parent=0 // loop_footer
    %s17 = sadd.s32 1, %s13
  $region7: #{_encode_stage.3} parent=0 // loop_footer_branch
    %12 = sbr.rel target = $region3
  $region8: #{_encode_stage.3} parent=0 // loop_exit
    _

// kernel: _encode_stage.2
$region0: #{_encode_stage.2}
  #allocation0 [shape = 'u32[]', space=smem, size = 0x4, offset = 0x4, fixed_abs, tag = 'smem constant byte address 0x4 - core index']
  #allocation1 [shape = 'u32[144,128]{1,0:T(1,128)}', space=vmem, size = 0x12000, scoped, tag = 'internal scratch']
  %s0 = inlined_call_operand.vmem [shape: f32[128,3], index: 0, kind: input, shape index: {}]
  %s1 = inlined_call_operand.vmem [shape: bf16[3,8], index: 1, kind: input, shape index: {}]
  %s2 = inlined_call_operand.vmem [shape: f32[1,8], index: 2, kind: input, shape index: {}]
  %s3 = inlined_call_operand.vmem [shape: bf16[8,16], index: 3, kind: input, shape index: {}]
  %s4 = inlined_call_operand.vmem [shape: f32[1,16], index: 4, kind: input, shape index: {}]
  %s5 = inlined_call_operand.vmem [shape: bf16[16,32], index: 5, kind: input, shape index: {}]
  %s6 = inlined_call_operand.vmem [shape: f32[1,32], index: 6, kind: input, shape index: {}]
  %s7 = inlined_call_operand.vmem [shape: f32[128,32], index: 7, kind: output, shape index: {}]
  %s8 = sld [smem:[#allocation0]]
  $region61: #{_encode_stage.2} parent=0
    _
  %s10 = ssub.s32 1, %s8
  %s11 = scalar_select 0, %s10, %s8
  loop: start=0, step=1, limit=4
  $region2: #{_encode_stage.2} parent=0 // loop_pre_header
    _
  $region3: #{_encode_stage.2} parent=0 // loop_header
    %s13 = sphi 0, %s17
    %p14 = scmp.ge.s32.totalorder %s13, 4
    %s23 = sphi 0, %s25
    %s26 = sphi 0, %s23
    %s27 = sphi 0, %s26
    %s43 = sphi 0, %s27
    %s47 = sphi 0, %s47
    %s49 = sphi 0, %s47
    %s50 = sphi 0, %s49
    %s64 = sphi 0, %s50
    %s68 = sphi 0, %s68
    %s70 = sphi 0, %s68
    %s71 = sphi 0, %s70
    %s85 = sphi 0, %s71
    %s89 = sphi 0, %s89
    %s91 = sphi 0, %s89
    %s92 = sphi 0, %s91
    %s106 = sphi 0, %s92
    %s110 = sphi 0, %s110
    %s112 = sphi 0, %s110
    %s113 = sphi 0, %s112
    %s127 = sphi 0, %s113
    %s131 = sphi 0, %s131
    %s133 = sphi 0, %s131
    %s134 = sphi 0, %s133
    %s148 = sphi 0, %s134
    %s152 = sphi 0, %s152
    %s154 = sphi 0, %s152
    %s155 = sphi 0, %s154
    %s169 = sphi 0, %s155
    %s175 = sphi 0, %s177
    %s178 = sphi 0, %s175
    %s179 = sphi 0, %s178
    %s195 = sphi 0, %s179
  $region4: #{_encode_stage.2} parent=0 // loop_header_branch
    %16 = sbr.rel (%p14) target = $region8
  $region5: #{_encode_stage.2} parent=0 // loop_body
    %s18 = ssub.s32 %s13, 1
    %s19 = ssub.s32 %s13, 2
    %s20 = sadd.s32 %s13, 1
    %s21 = ssub.s32 %s13, %s20
    %p22 = scmp.eq.s32.totalorder %s21, 0
    %s24 = sadd.s32 %s23, 1
    %s25 = scalar_select %p22, %s23, %s24
    %p28 = pneg %p22
    %p29 = scmp.eq.s32.totalorder %s13, 1
    %p30 = por %p28, %p29
    %p31 = scmp.ne.s32.totalorder %s23, %s26
    %p32 = scmp.eq.s32.totalorder %s13, 0
    %p33 = por %p31, %p32
    %p34 = scmp.ne.s32.totalorder %s23, %s26
    %p35 = scmp.eq.s32.totalorder %s18, 1
    %p36 = por %p34, %p35
    %p37 = scmp.ne.s32.totalorder %s26, %s27
    %p38 = scmp.eq.s32.totalorder %s18, 0
    %p39 = por %p37, %p38
    %p40 = scmp.ne.s32.totalorder %s26, %s27
    %p41 = scmp.eq.s32.totalorder %s19, 1
    %p42 = por %p40, %p41
    %p44 = scmp.ne.s32.totalorder %s27, %s43
    %p45 = scmp.eq.s32.totalorder %s19, 0
    %p46 = por %p44, %p45
    %s48 = sadd.s32 %s47, 1
    %p51 = scmp.eq.s32.totalorder %s13, 1
    %p52 = scmp.ne.s32.totalorder %s47, %s49
    %p53 = scmp.eq.s32.totalorder %s13, 0
    %p54 = por %p52, %p53
    %p55 = scmp.ne.s32.totalorder %s47, %s49
    %p56 = scmp.eq.s32.totalorder %s18, 1
    %p57 = por %p55, %p56
    %p58 = scmp.ne.s32.totalorder %s49, %s50
    %p59 = scmp.eq.s32.totalorder %s18, 0
    %p60 = por %p58, %p59
    %p61 = scmp.ne.s32.totalorder %s49, %s50
    %p62 = scmp.eq.s32.totalorder %s19, 1
    %p63 = por %p61, %p62
    %p65 = scmp.ne.s32.totalorder %s50, %s64
    %p66 = scmp.eq.s32.totalorder %s19, 0
    %p67 = por %p65, %p66
    %s69 = sadd.s32 %s68, 1
    %p72 = scmp.eq.s32.totalorder %s13, 1
    %p73 = scmp.ne.s32.totalorder %s68, %s70
    %p74 = scmp.eq.s32.totalorder %s13, 0
    %p75 = por %p73, %p74
    %p76 = scmp.ne.s32.totalorder %s68, %s70
    %p77 = scmp.eq.s32.totalorder %s18, 1
    %p78 = por %p76, %p77
    %p79 = scmp.ne.s32.totalorder %s70, %s71
    %p80 = scmp.eq.s32.totalorder %s18, 0
    %p81 = por %p79, %p80
    %p82 = scmp.ne.s32.totalorder %s70, %s71
    %p83 = scmp.eq.s32.totalorder %s19, 1
    %p84 = por %p82, %p83
    %p86 = scmp.ne.s32.totalorder %s71, %s85
    %p87 = scmp.eq.s32.totalorder %s19, 0
    %p88 = por %p86, %p87
    %s90 = sadd.s32 %s89, 1
    %p93 = scmp.eq.s32.totalorder %s13, 1
    %p94 = scmp.ne.s32.totalorder %s89, %s91
    %p95 = scmp.eq.s32.totalorder %s13, 0
    %p96 = por %p94, %p95
    %p97 = scmp.ne.s32.totalorder %s89, %s91
    %p98 = scmp.eq.s32.totalorder %s18, 1
    %p99 = por %p97, %p98
    %p100 = scmp.ne.s32.totalorder %s91, %s92
    %p101 = scmp.eq.s32.totalorder %s18, 0
    %p102 = por %p100, %p101
    %p103 = scmp.ne.s32.totalorder %s91, %s92
    %p104 = scmp.eq.s32.totalorder %s19, 1
    %p105 = por %p103, %p104
    %p107 = scmp.ne.s32.totalorder %s92, %s106
    %p108 = scmp.eq.s32.totalorder %s19, 0
    %p109 = por %p107, %p108
    %s111 = sadd.s32 %s110, 1
    %p114 = scmp.eq.s32.totalorder %s13, 1
    %p115 = scmp.ne.s32.totalorder %s110, %s112
    %p116 = scmp.eq.s32.totalorder %s13, 0
    %p117 = por %p115, %p116
    %p118 = scmp.ne.s32.totalorder %s110, %s112
    %p119 = scmp.eq.s32.totalorder %s18, 1
    %p120 = por %p118, %p119
    %p121 = scmp.ne.s32.totalorder %s112, %s113
    %p122 = scmp.eq.s32.totalorder %s18, 0
    %p123 = por %p121, %p122
    %p124 = scmp.ne.s32.totalorder %s112, %s113
    %p125 = scmp.eq.s32.totalorder %s19, 1
    %p126 = por %p124, %p125
    %p128 = scmp.ne.s32.totalorder %s113, %s127
    %p129 = scmp.eq.s32.totalorder %s19, 0
    %p130 = por %p128, %p129
    %s132 = sadd.s32 %s131, 1
    %p135 = scmp.eq.s32.totalorder %s13, 1
    %p136 = scmp.ne.s32.totalorder %s131, %s133
    %p137 = scmp.eq.s32.totalorder %s13, 0
    %p138 = por %p136, %p137
    %p139 = scmp.ne.s32.totalorder %s131, %s133
    %p140 = scmp.eq.s32.totalorder %s18, 1
    %p141 = por %p139, %p140
    %p142 = scmp.ne.s32.totalorder %s133, %s134
    %p143 = scmp.eq.s32.totalorder %s18, 0
    %p144 = por %p142, %p143
    %p145 = scmp.ne.s32.totalorder %s133, %s134
    %p146 = scmp.eq.s32.totalorder %s19, 1
    %p147 = por %p145, %p146
    %p149 = scmp.ne.s32.totalorder %s134, %s148
    %p150 = scmp.eq.s32.totalorder %s19, 0
    %p151 = por %p149, %p150
    %s153 = sadd.s32 %s152, 1
    %p156 = scmp.eq.s32.totalorder %s13, 1
    %p157 = scmp.ne.s32.totalorder %s152, %s154
    %p158 = scmp.eq.s32.totalorder %s13, 0
    %p159 = por %p157, %p158
    %p160 = scmp.ne.s32.totalorder %s152, %s154
    %p161 = scmp.eq.s32.totalorder %s18, 1
    %p162 = por %p160, %p161
    %p163 = scmp.ne.s32.totalorder %s154, %s155
    %p164 = scmp.eq.s32.totalorder %s18, 0
    %p165 = por %p163, %p164
    %p166 = scmp.ne.s32.totalorder %s154, %s155
    %p167 = scmp.eq.s32.totalorder %s19, 1
    %p168 = por %p166, %p167
    %p170 = scmp.ne.s32.totalorder %s155, %s169
    %p171 = scmp.eq.s32.totalorder %s19, 0
    %p172 = por %p170, %p171
    %s173 = ssub.s32 %s13, %s20
    %p174 = scmp.eq.s32.totalorder %s173, 0
    %s176 = sadd.s32 %s175, 1
    %s177 = scalar_select %p174, %s175, %s176
    %p180 = pneg %p174
    %p181 = scmp.eq.s32.totalorder %s13, 1
    %p182 = por %p180, %p181
    %p183 = scmp.ne.s32.totalorder %s175, %s178
    %p184 = scmp.eq.s32.totalorder %s13, 0
    %p185 = por %p183, %p184
    %p186 = scmp.ne.s32.totalorder %s175, %s178
    %p187 = scmp.eq.s32.totalorder %s18, 1
    %p188 = por %p186, %p187
    %p189 = scmp.ne.s32.totalorder %s178, %s179
    %p190 = scmp.eq.s32.totalorder %s18, 0
    %p191 = por %p189, %p190
    %p192 = scmp.ne.s32.totalorder %s178, %s179
    %p193 = scmp.eq.s32.totalorder %s19, 1
    %p194 = por %p192, %p193
    %p196 = scmp.ne.s32.totalorder %s179, %s195
    %p197 = scmp.eq.s32.totalorder %s19, 0
    %p198 = por %p196, %p197
    %p199 = scmp.le.s32.totalorder 1, %s13
    %p200 = scmp.lt.s32.totalorder %s13, 3
    %p201 = pnand %p199, %p200
    %p202 = pneg %p201
    // Predicated region
    $region9: #{_encode_stage.2} parent=5 // pred_check
      _
    $region10: #{_encode_stage.2} parent=5 // pred_check_branch
      %204 = sbr.rel (%p201) target = $region12
    $region11: #{_encode_stage.2} parent=5 // pred_region
      %s205 = ssub.s32 %s13, 1
      // Predicated region
      $region13: #{_encode_stage.2} parent=11 // pred_check
        %p206 = pneg %p60
      $region14: #{_encode_stage.2} parent=11 // pred_check_branch
        %208 = sbr.rel (%p206) target = $region16
      $region15: #{_encode_stage.2} parent=11 // pred_region
        _
      $region16: #{_encode_stage.2} parent=11 // pred_fallthru
        _
      // Predicated region
      $region17: #{_encode_stage.2} parent=11 // pred_check
        %p209 = pneg %p81
      $region18: #{_encode_stage.2} parent=11 // pred_check_branch
        %211 = sbr.rel (%p209) target = $region20
      $region19: #{_encode_stage.2} parent=11 // pred_region
        _
      $region20: #{_encode_stage.2} parent=11 // pred_fallthru
        _
      // Predicated region
      $region21: #{_encode_stage.2} parent=11 // pred_check
        %p212 = pneg %p102
      $region22: #{_encode_stage.2} parent=11 // pred_check_branch
        %214 = sbr.rel (%p212) target = $region24
      $region23: #{_encode_stage.2} parent=11 // pred_region
        _
      $region24: #{_encode_stage.2} parent=11 // pred_fallthru
        _
      // Predicated region
      $region25: #{_encode_stage.2} parent=11 // pred_check
        %p215 = pneg %p123
      $region26: #{_encode_stage.2} parent=11 // pred_check_branch
        %217 = sbr.rel (%p215) target = $region28
      $region27: #{_encode_stage.2} parent=11 // pred_region
        _
      $region28: #{_encode_stage.2} parent=11 // pred_fallthru
        _
      // Predicated region
      $region29: #{_encode_stage.2} parent=11 // pred_check
        %p218 = pneg %p144
      $region30: #{_encode_stage.2} parent=11 // pred_check_branch
        %220 = sbr.rel (%p218) target = $region32
      $region31: #{_encode_stage.2} parent=11 // pred_region
        _
      $region32: #{_encode_stage.2} parent=11 // pred_fallthru
        _
      // Predicated region
      $region33: #{_encode_stage.2} parent=11 // pred_check
        %p221 = pneg %p165
      $region34: #{_encode_stage.2} parent=11 // pred_check_branch
        %223 = sbr.rel (%p221) target = $region36
      $region35: #{_encode_stage.2} parent=11 // pred_region
        _
      $region36: #{_encode_stage.2} parent=11 // pred_fallthru
        _
    $region12: #{_encode_stage.2} parent=5 // pred_fallthru
      _
    %p224 = scmp.lt.s32.totalorder %s13, 2
    // Predicated region
    $region37: #{_encode_stage.2} parent=5 // pred_check
      %p225 = pneg %p224
    $region38: #{_encode_stage.2} parent=5 // pred_check_branch
      %227 = sbr.rel (%p225) target = $region40
    $region39: #{_encode_stage.2} parent=5 // pred_region
      // Predicated region
      $region41: #{_encode_stage.2} parent=39 // pred_check
        %p228 = pneg %p33
      $region42: #{_encode_stage.2} parent=39 // pred_check_branch
        %230 = sbr.rel (%p228) target = $region44
      $region43: #{_encode_stage.2} parent=39 // pred_region
        %s231 = smul.u32 8, %s13
        %p232 = scmp.lt.s32.totalorder %s231, 15
        %s233 = scalar_select %p232, %s231, 15
        %s234 = smul.addr %s233, 8
        %s235 = scalar_lea.vmem %s0, %s234
        %s236 = smul.u32 8, %s13
      $region44: #{_encode_stage.2} parent=39 // pred_fallthru
        _
    $region40: #{_encode_stage.2} parent=5 // pred_fallthru
      _
    %p237 = scmp.le.s32.totalorder 1, %s13
    %p238 = scmp.lt.s32.totalorder %s13, 3
    %p239 = pnand %p237, %p238
    %p240 = pneg %p239
    // Predicated region
    $region45: #{_encode_stage.2} parent=5 // pred_check
      _
    $region46: #{_encode_stage.2} parent=5 // pred_check_branch
      %242 = sbr.rel (%p239) target = $region48
    $region47: #{_encode_stage.2} parent=5 // pred_region
      %s243 = ssub.s32 %s13, 1
      %s244 = smul.u32 8, %s18
      %p245 = scmp.lt.s32.totalorder %s244, 15
      %s246 = scalar_select %p245, %s244, 15
      %s247 = smul.addr %s246, 8
      %s248 = scalar_lea.vmem %s0, %s247
      %p249 = pneg %p39
      %p250 = pneg %p36
      %p251 = pneg %p60
      %p252 = pneg %p57
      %p253 = pneg %p81
      %p254 = pneg %p78
      %p255 = pneg %p102
      %p256 = pneg %p99
      %p257 = pneg %p123
      %p258 = pneg %p120
      %p259 = pneg %p144
      %p260 = pneg %p141
      %p261 = pneg %p165
      %p262 = pneg %p162
      %p263 = pneg %p191
      %p264 = pneg %p188
      %s265 = smul.u32 8, %s18
      %p266 = scmp.lt.s32.totalorder %s265, 15
      %s267 = scalar_select %p266, %s265, 15
      %s268 = smul.addr %s267, 8
      %s269 = scalar_lea.vmem %s7, %s268
      %s270 = smul.u32 8, %s18
      %p271 = scmp.lt.s32.totalorder %s270, 15
      %s272 = scalar_select %p271, %s270, 15
      %s273 = smul.addr %s272, 8
      %s274 = scalar_lea.vmem %s0, %s273
      %s275 = smul.u32 8, %s18
      %s276 = smul.u32 8, %s18
      %p277 = scmp.lt.s32.totalorder %s276, 15
      %s278 = scalar_select %p277, %s276, 15
      %s279 = smul.addr %s278, 8
      %s280 = scalar_lea.vmem %s7, %s279
      %s281 = smul.u32 8, %s18
      %v283 = vld [vmem:[%s274] sm:$0xff]
      %v284 = vld [vmem:[%s274 + $0x8] sm:$0xff]
      %v285 = vld [vmem:[%s274 + $0x10] sm:$0xff]
      %v286 = vld [vmem:[%s274 + $0x18] sm:$0xff]
      %v287 = vld [vmem:[%s274 + $0x20] sm:$0xff]
      %v288 = vld [vmem:[%s274 + $0x28] sm:$0xff]
      %v289 = vld [vmem:[%s274 + $0x30] sm:$0xff]
      %v290 = vld [vmem:[%s274 + $0x38] sm:$0xff]
      %v291 = vld [vmem:[%s1] sm:$0x3]
      %v292 = vld [vmem:[%s2] sm:$0x1]
      %v293 = vpack.c.bf16 %v284, %v283
      %v294 = vpack.c.bf16 %v286, %v285
      %v295 = vpack.c.bf16 %v288, %v287
      %v296 = vpack.c.bf16 %v290, %v289
      %v298 = vlaneseq
      %v299 = vshrl.u32 %v298, 7
      %v300 = vsub.s32 0, %v299
      %v301 = vrot.slane %v292, %v300
      %vm303 = vcmask 23552
      %v305 = vsel %vm303, %v293, 0
      %v308 = vsel %vm303, %v294, 0
      %v311 = vsel %vm303, %v295, 0
      %v314 = vsel %vm303, %v296, 0
      %vm316 = vcmask 1040384
      %vm317 = vcmask 1041408
      %v318 = vsel %vm316, 4294967295, 65535
      %v319 = vsel %vm317, %v318, 0
      %v321 = vand.u32 %v291, %v319
      %323 = vmatprep.subr.bf16.mxu0 0
      %324 = vmatpush1.bf16.msra.mxu0 %v321
      %325 = vmatprep.subr.bf16.mxu0 0
      %326 = vmatpush1.bf16.msra.mxu0 0
      %327 = vmatprep.subr.bf16.mxu0 0
      %328 = vmatpush1.bf16.msra.mxu0 0
      %329 = vmatprep.subr.bf16.mxu0 0
      %330 = vmatpush1.bf16.msra.mxu0 0
      %331 = vmatprep.subr.bf16.mxu0 0
      %332 = vmatpush1.bf16.msra.mxu0 0
      %333 = vmatprep.subr.bf16.mxu0 0
      %334 = vmatpush1.bf16.msra.mxu0 0
      %335 = vmatprep.subr.bf16.mxu0 0
      %336 = vmatpush1.bf16.msra.mxu0 0
      %337 = vmatprep.subr.bf16.mxu0 0
      %338 = vmatpush1.bf16.msra.mxu0 0
      %339 = vmatprep.subr.bf16.mxu0 0
      %340 = vmatpush1.bf16.msra.mxu0 0
      %341 = vmatprep.subr.bf16.mxu0 0
      %342 = vmatpush1.bf16.msra.mxu0 0
      %343 = vmatprep.subr.bf16.mxu0 0
      %344 = vmatpush1.bf16.msra.mxu0 0
      %345 = vmatprep.subr.bf16.mxu0 0
      %346 = vmatpush1.bf16.msra.mxu0 0
      %347 = vmatprep.subr.bf16.mxu0 0
      %348 = vmatpush1.bf16.msra.mxu0 0
      %349 = vmatprep.subr.bf16.mxu0 0
      %350 = vmatpush1.bf16.msra.mxu0 0
      %351 = vmatprep.subr.bf16.mxu0 0
      %352 = vmatpush1.bf16.msra.mxu0 0
      %353 = vmatprep.subr.bf16.mxu0 0
      %354 = vmatpush1.bf16.msra.mxu0 0
      %355 = vmatprep.mubr.bf16.mxu0 0
      %356 = vmatmul.mubr.bf16.gmra.mrb[0].mxu0 %v305
      %v357 = vpop.f32.mrb[0].mxu0
      %v358 = vadd.f32 %v301, %v357
      %v359 = vpop.f32.mrb[0].mxu0
      %v360 = vpop.f32.mrb[0].mxu0
      %v361 = vadd.f32 %v301, %v360
      %v362 = vpop.f32.mrb[0].mxu0
      %363 = vmatprep.mubr.bf16.mxu0 0
      %364 = vmatmul.mubr.bf16.gmra.mrb[0].mxu0 %v308
      %v365 = vpop.f32.mrb[0].mxu0
      %v366 = vadd.f32 %v301, %v365
      %v367 = vpop.f32.mrb[0].mxu0
      %v368 = vpop.f32.mrb[0].mxu0
      %v369 = vadd.f32 %v301, %v368
      %v370 = vpop.f32.mrb[0].mxu0
      %371 = vmatprep.mubr.bf16.mxu0 0
      %372 = vmatmul.mubr.bf16.gmra.mrb[0].mxu0 %v311
      %v373 = vpop.f32.mrb[0].mxu0
      %v374 = vadd.f32 %v301, %v373
      %v375 = vpop.f32.mrb[0].mxu0
      %v376 = vpop.f32.mrb[0].mxu0
      %v377 = vadd.f32 %v301, %v376
      %v378 = vpop.f32.mrb[0].mxu0
      %379 = vmatprep.mubr.bf16.mxu0 0
      %380 = vmatmul.mubr.bf16.gmra.mrb[0].mxu0 %v314
      %v381 = vpop.f32.mrb[0].mxu0
      %v382 = vadd.f32 %v301, %v381
      %v383 = vpop.f32.mrb[0].mxu0
      %v384 = vpop.f32.mrb[0].mxu0
      %v385 = vadd.f32 %v301, %v384
      %v386 = vpop.f32.mrb[0].mxu0
      %387 = vdwg.mxu0
      %v388 = vmax.f32 %v358, 0.0
      %v389 = vmax.f32 %v361, 0.0
      %v390 = vmax.f32 %v366, 0.0
      %v391 = vmax.f32 %v369, 0.0
      %v392 = vmax.f32 %v374, 0.0
      %v393 = vmax.f32 %v377, 0.0
      %v394 = vmax.f32 %v382, 0.0
      %v395 = vmax.f32 %v385, 0.0
      %v396 = vld [vmem:[%s3] sm:$0xf]
      %v397 = vld [vmem:[%s4] sm:$0x1]
      %v398 = vpack.c.bf16 %v389, %v388
      %v399 = vpack.c.bf16 %v391, %v390
      %v400 = vpack.c.bf16 %v393, %v392
      %v401 = vpack.c.bf16 %v395, %v394
      %v403 = vlaneseq
      %v404 = vshrl.u32 %v403, 7
      %v405 = vsub.s32 0, %v404
      %v406 = vrot.slane %v397, %v405
      %vm408 = vcmask 64512
      %v410 = vsel %vm408, %v398, 0
      %v413 = vsel %vm408, %v399, 0
      %v416 = vsel %vm408, %v400, 0
      %v419 = vsel %vm408, %v401, 0
      %vm421 = vcmask 1043456
      %v423 = vsel %vm421, %v396, 0
      %425 = vmatprep.subr.bf16.mxu0 0
      %426 = vmatpush1.bf16.msra.mxu0 %v423
      %427 = vmatprep.subr.bf16.mxu0 0
      %428 = vmatpush1.bf16.msra.mxu0 0
      %429 = vmatprep.subr.bf16.mxu0 0
      %430 = vmatpush1.bf16.msra.mxu0 0
      %431 = vmatprep.subr.bf16.mxu0 0
      %432 = vmatpush1.bf16.msra.mxu0 0
      %433 = vmatprep.subr.bf16.mxu0 0
      %434 = vmatpush1.bf16.msra.mxu0 0
      %435 = vmatprep.subr.bf16.mxu0 0
      %436 = vmatpush1.bf16.msra.mxu0 0
      %437 = vmatprep.subr.bf16.mxu0 0
      %438 = vmatpush1.bf16.msra.mxu0 0
      %439 = vmatprep.subr.bf16.mxu0 0
      %440 = vmatpush1.bf16.msra.mxu0 0
      %441 = vmatprep.subr.bf16.mxu0 0
      %442 = vmatpush1.bf16.msra.mxu0 0
      %443 = vmatprep.subr.bf16.mxu0 0
      %444 = vmatpush1.bf16.msra.mxu0 0
      %445 = vmatprep.subr.bf16.mxu0 0
      %446 = vmatpush1.bf16.msra.mxu0 0
      %447 = vmatprep.subr.bf16.mxu0 0
      %448 = vmatpush1.bf16.msra.mxu0 0
      %449 = vmatprep.subr.bf16.mxu0 0
      %450 = vmatpush1.bf16.msra.mxu0 0
      %451 = vmatprep.subr.bf16.mxu0 0
      %452 = vmatpush1.bf16.msra.mxu0 0
      %453 = vmatprep.subr.bf16.mxu0 0
      %454 = vmatpush1.bf16.msra.mxu0 0
      %455 = vmatprep.subr.bf16.mxu0 0
      %456 = vmatpush1.bf16.msra.mxu0 0
      %457 = vmatprep.mubr.bf16.mxu0 0
      %458 = vmatmul.mubr.bf16.gmra.mrb[0].mxu0 %v410
      %v459 = vpop.f32.mrb[0].mxu0
      %v460 = vadd.f32 %v406, %v459
      %v461 = vpop.f32.mrb[0].mxu0
      %v462 = vpop.f32.mrb[0].mxu0
      %v463 = vadd.f32 %v406, %v462
      %v464 = vpop.f32.mrb[0].mxu0
      %465 = vmatprep.mubr.bf16.mxu0 0
      %466 = vmatmul.mubr.bf16.gmra.mrb[0].mxu0 %v413
      %v467 = vpop.f32.mrb[0].mxu0
      %v468 = vadd.f32 %v406, %v467
      %v469 = vpop.f32.mrb[0].mxu0
      %v470 = vpop.f32.mrb[0].mxu0
      %v471 = vadd.f32 %v406, %v470
      %v472 = vpop.f32.mrb[0].mxu0
      %473 = vmatprep.mubr.bf16.mxu0 0
      %474 = vmatmul.mubr.bf16.gmra.mrb[0].mxu0 %v416
      %v475 = vpop.f32.mrb[0].mxu0
      %v476 = vadd.f32 %v406, %v475
      %v477 = vpop.f32.mrb[0].mxu0
      %v478 = vpop.f32.mrb[0].mxu0
      %v479 = vadd.f32 %v406, %v478
      %v480 = vpop.f32.mrb[0].mxu0
      %481 = vmatprep.mubr.bf16.mxu0 0
      %482 = vmatmul.mubr.bf16.gmra.mrb[0].mxu0 %v419
      %v483 = vpop.f32.mrb[0].mxu0
      %v484 = vadd.f32 %v406, %v483
      %v485 = vpop.f32.mrb[0].mxu0
      %v486 = vpop.f32.mrb[0].mxu0
      %v487 = vadd.f32 %v406, %v486
      %v488 = vpop.f32.mrb[0].mxu0
      %489 = vdwg.mxu0
      %v490 = vmax.f32 %v460, 0.0
      %v491 = vmax.f32 %v463, 0.0
      %v492 = vmax.f32 %v468, 0.0
      %v493 = vmax.f32 %v471, 0.0
      %v494 = vmax.f32 %v476, 0.0
      %v495 = vmax.f32 %v479, 0.0
      %v496 = vmax.f32 %v484, 0.0
      %v497 = vmax.f32 %v487, 0.0
      %v498 = vld [vmem:[%s5] sm:$0xf]
      %v499 = vld [vmem:[%s5 + $0x4] sm:$0xf]
      %v500 = vld [vmem:[%s6] sm:$0x1]
      %v501 = vpack.c.bf16 %v491, %v490
      %v502 = vpack.c.bf16 %v493, %v492
      %v503 = vpack.c.bf16 %v495, %v494
      %v504 = vpack.c.bf16 %v497, %v496
      %v506 = vlaneseq
      %v507 = vshrl.u32 %v506, 7
      %v508 = vsub.s32 0, %v507
      %v509 = vrot.slane %v500, %v508
      %v513 = vunpack.c.l.b16 %v498
      %v514 = vunpack.c.l.b16 %v499
      %v515 = vpack.c.b16 %v514, %v513
      %vm517 = vcmask 130048
      %v519 = vsel %vm517, %v501, 0
      %v522 = vsel %vm517, %v502, 0
      %v525 = vsel %vm517, %v503, 0
      %v528 = vsel %vm517, %v504, 0
      %530 = vmatprep.subr.bf16.mxu0 0
      %531 = vmatpush1.bf16.msra.mxu0 %v515
      %532 = vmatprep.subr.bf16.mxu0 0
      %533 = vmatpush1.bf16.msra.mxu0 0
      %534 = vmatprep.subr.bf16.mxu0 0
      %535 = vmatpush1.bf16.msra.mxu0 0
      %536 = vmatprep.subr.bf16.mxu0 0
      %537 = vmatpush1.bf16.msra.mxu0 0
      %538 = vmatprep.subr.bf16.mxu0 0
      %539 = vmatpush1.bf16.msra.mxu0 0
      %540 = vmatprep.subr.bf16.mxu0 0
      %541 = vmatpush1.bf16.msra.mxu0 0
      %542 = vmatprep.subr.bf16.mxu0 0
      %543 = vmatpush1.bf16.msra.mxu0 0
      %544 = vmatprep.subr.bf16.mxu0 0
      %545 = vmatpush1.bf16.msra.mxu0 0
      %546 = vmatprep.subr.bf16.mxu0 0
      %547 = vmatpush1.bf16.msra.mxu0 0
      %548 = vmatprep.subr.bf16.mxu0 0
      %549 = vmatpush1.bf16.msra.mxu0 0
      %550 = vmatprep.subr.bf16.mxu0 0
      %551 = vmatpush1.bf16.msra.mxu0 0
      %552 = vmatprep.subr.bf16.mxu0 0
      %553 = vmatpush1.bf16.msra.mxu0 0
      %554 = vmatprep.subr.bf16.mxu0 0
      %555 = vmatpush1.bf16.msra.mxu0 0
      %556 = vmatprep.subr.bf16.mxu0 0
      %557 = vmatpush1.bf16.msra.mxu0 0
      %558 = vmatprep.subr.bf16.mxu0 0
      %559 = vmatpush1.bf16.msra.mxu0 0
      %560 = vmatprep.subr.bf16.mxu0 0
      %561 = vmatpush1.bf16.msra.mxu0 0
      %562 = vmatprep.mubr.bf16.mxu0 0
      %563 = vmatmul.mubr.bf16.gmra.mrb[0].mxu0 %v519
      %v564 = vpop.f32.mrb[0].mxu0
      %v565 = vadd.f32 %v509, %v564
      %v566 = vpop.f32.mrb[0].mxu0
      %v567 = vpop.f32.mrb[0].mxu0
      %v568 = vadd.f32 %v509, %v567
      %v569 = vpop.f32.mrb[0].mxu0
      %570 = vmatprep.mubr.bf16.mxu0 0
      %571 = vmatmul.mubr.bf16.gmra.mrb[0].mxu0 %v522
      %v572 = vpop.f32.mrb[0].mxu0
      %v573 = vadd.f32 %v509, %v572
      %v574 = vpop.f32.mrb[0].mxu0
      %v575 = vpop.f32.mrb[0].mxu0
      %v576 = vadd.f32 %v509, %v575
      %v577 = vpop.f32.mrb[0].mxu0
      %578 = vmatprep.mubr.bf16.mxu0 0
      %579 = vmatmul.mubr.bf16.gmra.mrb[0].mxu0 %v525
      %v580 = vpop.f32.mrb[0].mxu0
      %v581 = vadd.f32 %v509, %v580
      %v582 = vpop.f32.mrb[0].mxu0
      %v583 = vpop.f32.mrb[0].mxu0
      %v584 = vadd.f32 %v509, %v583
      %v585 = vpop.f32.mrb[0].mxu0
      %586 = vmatprep.mubr.bf16.mxu0 0
      %587 = vmatmul.mubr.bf16.gmra.mrb[0].mxu0 %v528
      %v588 = vpop.f32.mrb[0].mxu0
      %v589 = vadd.f32 %v509, %v588
      %v590 = vpop.f32.mrb[0].mxu0
      %v591 = vpop.f32.mrb[0].mxu0
      %v592 = vadd.f32 %v509, %v591
      %v593 = vpop.f32.mrb[0].mxu0
      %594 = vdwg.mxu0
      %vm595 = vcmask 261120
      %596 = vst.msk [vmem:[%s280] sm:$0xff] %vm595, %v565
      %597 = vst.msk [vmem:[%s280 + $0x8] sm:$0xff] %vm595, %v568
      %598 = vst.msk [vmem:[%s280 + $0x10] sm:$0xff] %vm595, %v573
      %599 = vst.msk [vmem:[%s280 + $0x18] sm:$0xff] %vm595, %v576
      %600 = vst.msk [vmem:[%s280 + $0x20] sm:$0xff] %vm595, %v581
      %601 = vst.msk [vmem:[%s280 + $0x28] sm:$0xff] %vm595, %v584
      %602 = vst.msk [vmem:[%s280 + $0x30] sm:$0xff] %vm595, %v589
      %603 = vst.msk [vmem:[%s280 + $0x38] sm:$0xff] %vm595, %v592
      %s604 = smul.u32 8, %s18
      %p605 = scmp.lt.s32.totalorder %s604, 15
      %s606 = scalar_select %p605, %s604, 15
      %s607 = smul.addr %s606, 8
      %s608 = scalar_lea.vmem %s7, %s607
      // Predicated region
      $region49: #{_encode_stage.2} parent=47 // pred_check
        %p609 = pneg %p188
      $region50: #{_encode_stage.2} parent=47 // pred_check_branch
        %611 = sbr.rel (%p609) target = $region52
      $region51: #{_encode_stage.2} parent=47 // pred_region
        %s612 = smul.u32 8, %s18
      $region52: #{_encode_stage.2} parent=47 // pred_fallthru
        _
    $region48: #{_encode_stage.2} parent=5 // pred_fallthru
      _
    %p613 = scmp.le.s32.totalorder 2, %s13
    // Predicated region
    $region53: #{_encode_stage.2} parent=5 // pred_check
      %p614 = pneg %p613
    $region54: #{_encode_stage.2} parent=5 // pred_check_branch
      %616 = sbr.rel (%p614) target = $region56
    $region55: #{_encode_stage.2} parent=5 // pred_region
      %s617 = ssub.s32 %s13, 2
      // Predicated region
      $region57: #{_encode_stage.2} parent=55 // pred_check
        %p618 = pneg %p194
      $region58: #{_encode_stage.2} parent=55 // pred_check_branch
        %620 = sbr.rel (%p618) target = $region60
      $region59: #{_encode_stage.2} parent=55 // pred_region
        %s621 = smul.u32 8, %s19
        %p622 = scmp.lt.s32.totalorder %s621, 15
        %s623 = scalar_select %p622, %s621, 15
        %s624 = smul.addr %s623, 8
        %s625 = scalar_lea.vmem %s7, %s624
      $region60: #{_encode_stage.2} parent=55 // pred_fallthru
        _
    $region56: #{_encode_stage.2} parent=5 // pred_fallthru
      _
  $region6: #{_encode_stage.2} parent=0 // loop_footer
    %s17 = sadd.s32 1, %s13
  $region7: #{_encode_stage.2} parent=0 // loop_footer_branch
    %12 = sbr.rel target = $region3
  $region8: #{_encode_stage.2} parent=0 // loop_exit
    _

</llo_original>
